<compile_context>
chip_gen: v7x
topology: tpu7x:2x2x1
jax: 0.10.0
libtpu: 0.0.40
codegen_flags: <defaults>
</compile_context>

<pallas_src>
import functools

import jax
import jax.numpy as jnp
from jax import lax
from jax.experimental import pallas as pl
from jax.experimental.pallas import tpu as pltpu

EPS = 1e-5


def _conv_stats_kernel(mask_ref, w_ref, x_ref, y_ref, sum_ref, ssq_ref, acc_ref,
                       *, cin, kh_sz, kw_sz, wp, lw):
    # mask_ref: (1, Lw)  f32   1.0 on valid columns, 0.0 on row-wrap garbage
    # w_ref:    (Cout, KH*KW*Cin) bf16, tap-major / Cin-minor
    # x_ref:    (1, Cin, Lx) bf16   padded input image, spatially flattened
    # y_ref:    (1, Cout, Lw) bf16  pre-BN conv output (flat, incl. garbage cols)
    # sum/ssq:  (Cout, 1) f32       resident cross-image BN-stat accumulators
    # acc_ref:  (Cout, Lw) f32      VMEM scratch accumulator
    @pl.when(pl.program_id(0) == 0)
    def _():
        sum_ref[...] = jnp.zeros_like(sum_ref)
        ssq_ref[...] = jnp.zeros_like(ssq_ref)

    acc_ref[...] = jnp.zeros_like(acc_ref)
    # In-kernel tap accumulation: replaces the old 9x materialized im2col.
    for t in range(kh_sz * kw_sz):
        kh, kw = divmod(t, kw_sz)
        off = kh * wp + kw
        xs = x_ref[0, :, off:off + lw]                     # (Cin, Lw)  bf16
        wt = w_ref[:, t * cin:(t + 1) * cin]               # (Cout, Cin) bf16
        acc_ref[...] += jnp.dot(wt, xs, preferred_element_type=jnp.float32)

    y = acc_ref[...]                                       # f32 MXU result
    ym = y * mask_ref[...]                                 # zero garbage columns
    sum_ref[...] += jnp.sum(ym, axis=-1, keepdims=True)
    ssq_ref[...] += jnp.sum(ym * y, axis=-1, keepdims=True)
    # bf16 intermediate (stats above were taken from the exact f32 result).
    y_ref[0] = y.astype(y_ref.dtype)


def _bn_relu_kernel(y_ref, scale_ref, shift_ref, o_ref, *, wo):
    # y_ref: (1, Cout, Ho, Wp) bf16 ; scale/shift: (Cout, 1, 1) f32
    # o_ref: (1, Cout, Ho, Wo) f32  -- final NCHW output written directly
    y = y_ref[0, :, :, :wo].astype(jnp.float32)            # drop garbage columns
    o_ref[0] = jnp.maximum(y * scale_ref[...] + shift_ref[...], 0.0)


@functools.partial(jax.jit, static_argnames=("stride", "padding"))
def conv_block_forward(x_nchw, weight, bias, gamma, beta, *, stride=1, padding=1):
    """x_nchw: (N, Cin, H, W); weight: (Cout, Cin, KH, KW) (PyTorch layout)."""
    del bias  # Exactly cancelled by training-mode BatchNorm mean subtraction.
    if stride != 1:
        # TODO(synk): stride > 1 needs stride^2 phase-decimated input planes for the
        # in-kernel tap accumulation; not implemented in this fused path.
        raise NotImplementedError("fused Conv_Block kernel supports stride=1 only")

    N, Cin, H, W = x_nchw.shape
    Cout, _, KH, KW = weight.shape
    Hp, Wp = H + 2 * padding, W + 2 * padding
    Ho, Wo = Hp - KH + 1, Wp - KW + 1
    M = N * Ho * Wo                       # number of valid BN samples per channel
    K = KH * KW * Cin
    Lw = Ho * Wp                          # per-image flat output length (incl. garbage cols)
    Lx = (Hp + 1) * Wp                    # one extra zero row keeps every tap slice in bounds

    # --- glue (input-sized only): single pad, free reshape, bf16 cast --------
    xpad = jnp.pad(x_nchw.astype(jnp.bfloat16),
                   ((0, 0), (0, 0), (padding, padding + 1), (padding, padding)))
    x_flat = xpad.reshape(N, Cin, Lx)
    w_t = jnp.transpose(weight, (0, 2, 3, 1)).reshape(Cout, K).astype(jnp.bfloat16)
    mask = (jnp.arange(Lw, dtype=jnp.int32) % Wp < Wo).astype(jnp.float32).reshape(1, Lw)

    kern1 = functools.partial(_conv_stats_kernel,
                              cin=Cin, kh_sz=KH, kw_sz=KW, wp=Wp, lw=Lw)

    # --- pass 1: in-kernel tap-accumulated conv + cross-image BN stats -------
    # TODO(synk): for N==1 / very large images add an Ho-tile grid axis, and on v7x a
    # core-parallel axis with per-core partial (sum, ssq) combined in the host fold.
    y_flat, sums, ssq = pl.pallas_call(
        kern1,
        out_shape=(
            jax.ShapeDtypeStruct((N, Cout, Lw), jnp.bfloat16),
            jax.ShapeDtypeStruct((Cout, 1), jnp.float32),
            jax.ShapeDtypeStruct((Cout, 1), jnp.float32),
        ),
        grid=(N,),
        in_specs=[
            pl.BlockSpec((1, Lw), lambda n: (0, 0)),            # mask (loaded once)
            pl.BlockSpec((Cout, K), lambda n: (0, 0)),          # weights (loaded once)
            pl.BlockSpec((1, Cin, Lx), lambda n: (n, 0, 0)),    # per-image padded plane
        ],
        out_specs=(
            pl.BlockSpec((1, Cout, Lw), lambda n: (n, 0, 0)),
            pl.BlockSpec((Cout, 1), lambda n: (0, 0)),          # resident accumulator
            pl.BlockSpec((Cout, 1), lambda n: (0, 0)),          # resident accumulator
        ),
        scratch_shapes=[pltpu.VMEM((Cout, Lw), jnp.float32)],
        compiler_params=pltpu.CompilerParams(
            dimension_semantics=("arbitrary",),                 # stats accumulate over N
            vmem_limit_bytes=64 * 1024 * 1024,
        ),
    )(mask, w_t, x_flat)

    # --- fold BN (training-mode, biased var, eps=1e-5) into scale/shift ------
    mean = sums[:, 0] / M
    var = jnp.maximum(ssq[:, 0] / M - mean * mean, 0.0)   # clamp one-pass cancellation
    scale = gamma.astype(jnp.float32) * lax.rsqrt(var + EPS)
    shift = beta.astype(jnp.float32) - mean * scale

    # --- pass 2: scale/shift + ReLU, dropping garbage cols, direct NCHW write -
    y4 = y_flat.reshape(N, Cout, Ho, Wp)                   # free (contiguous) reshape
    kern2 = functools.partial(_bn_relu_kernel, wo=Wo)
    out = pl.pallas_call(
        kern2,
        out_shape=jax.ShapeDtypeStruct((N, Cout, Ho, Wo), jnp.float32),
        grid=(N,),
        in_specs=[
            pl.BlockSpec((1, Cout, Ho, Wp), lambda n: (n, 0, 0, 0)),
            pl.BlockSpec((Cout, 1, 1), lambda n: (0, 0, 0)),
            pl.BlockSpec((Cout, 1, 1), lambda n: (0, 0, 0)),
        ],
        out_specs=pl.BlockSpec((1, Cout, Ho, Wo), lambda n: (n, 0, 0, 0)),
        compiler_params=pltpu.CompilerParams(
            dimension_semantics=("parallel",),
            vmem_limit_bytes=64 * 1024 * 1024,
        ),
    )(y4, scale.reshape(Cout, 1, 1), shift.reshape(Cout, 1, 1))
    return out


def _reference(x, weight, bias, gamma, beta, *, stride=1, padding=1,
               emulate_kernel=False):
    """Pure-JAX reference mirroring PyTorch Conv2d + BatchNorm2d(train) + ReLU.

    emulate_kernel=True matches the kernel's precision choices: bf16 conv operands,
    f32 accumulation / stats, bf16 rounding of the pre-BN intermediate, bias dropped.
    """
    xw, ww, bw = x, weight, bias
    if emulate_kernel:
        xw = x.astype(jnp.bfloat16).astype(jnp.float32)
        ww = weight.astype(jnp.bfloat16).astype(jnp.float32)
        bw = jnp.zeros_like(bias)
    y = lax.conv_general_dilated(
        xw, ww, window_strides=(stride, stride),
        padding=[(padding, padding), (padding, padding)],
        dimension_numbers=("NCHW", "OIHW", "NCHW"),
        precision=lax.Precision.HIGHEST,
    ) + bw.reshape(1, -1, 1, 1)
    mean = jnp.mean(y, axis=(0, 2, 3), keepdims=True)
    var = jnp.mean((y - mean) ** 2, axis=(0, 2, 3), keepdims=True)
    if emulate_kernel:
        y = y.astype(jnp.bfloat16).astype(jnp.float32)     # bf16 intermediate
    y_bn = (y - mean) * lax.rsqrt(var + EPS) * gamma.reshape(1, -1, 1, 1) \
           + beta.reshape(1, -1, 1, 1)
    return jnp.maximum(y_bn, 0.0)


if __name__ == "__main__":
    # Conv_Block(in_channels=4, out_channels=8, kernel_size=3, stride=1, padding=1)
    N, Cin, H, W = 2, 4, 16, 16
    Cout, KH, KW = 8, 3, 3
    stride, padding = 1, 1

    key = jax.random.PRNGKey(0)
    k_w, k_b, k_x = jax.random.split(key, 3)

    fan_in = Cin * KH * KW
    bound = 1.0 / (fan_in ** 0.5)
    weight = jax.random.uniform(
        k_w, (Cout, Cin, KH, KW), jnp.float32, minval=-bound, maxval=bound)
    bias = jax.random.uniform(
        k_b, (Cout,), jnp.float32, minval=-bound, maxval=bound)
    gamma = jnp.ones((Cout,), jnp.float32)   # BatchNorm2d default init
    beta = jnp.zeros((Cout,), jnp.float32)
    x = jax.random.normal(k_x, (N, Cin, H, W), jnp.float32)

    out = conv_block_forward(x, weight, bias, gamma, beta,
                             stride=stride, padding=padding)
    out = jax.block_until_ready(out)
    assert out.shape == (N, Cout, H, W), out.shape

    # Check vs a reference that matches the kernel's precision (bf16 operands,
    # f32 stats, bf16 intermediate, bias cancels).
    ref_emul = _reference(x, weight, bias, gamma, beta,
                          stride=stride, padding=padding, emulate_kernel=True)
    err_emul = float(jnp.max(jnp.abs(out - ref_emul)))
    assert jnp.allclose(out, ref_emul, rtol=2e-2, atol=2e-2), err_emul

    # Loose check vs the full-f32 PyTorch-semantics reference (bias included; it
    # cancels under train-mode BN). Remaining delta is bf16 operand + intermediate rounding.
    ref_f32 = _reference(x, weight, bias, gamma, beta,
                         stride=stride, padding=padding)
    err_f32 = float(jnp.max(jnp.abs(out - ref_f32)))
    assert jnp.allclose(out, ref_f32, rtol=5e-2, atol=5e-2), err_f32

    print("KERNEL_OK")
</pallas_src>

<mosaic_0001>
module attributes {stable_mosaic.version = 11 : i64} {
  func.func @_conv_stats_kernel(%arg0: i32, %arg1: memref<1x288xf32, #tpu.memory_space<vmem>>, %arg2: memref<8x36xbf16, #tpu.memory_space<vmem>>, %arg3: memref<1x4x342xbf16, #tpu.memory_space<vmem>>, %arg4: memref<1x8x288xbf16, #tpu.memory_space<vmem>>, %arg5: memref<8x1xf32, #tpu.memory_space<vmem>>, %arg6: memref<8x1xf32, #tpu.memory_space<vmem>>, %arg7: memref<8x288xf32, #tpu.memory_space<vmem>>) attributes {dimension_semantics = [#tpu.dimension_semantics<arbitrary>], iteration_bounds = array<i64: 2>, scalar_prefetch = 0 : i64, scratch_operands = 1 : i64, tpu.core_type = #tpu.core_type<tc>, window_params = [{pipeline_mode = #tpu.pipeline_mode<synchronous>, transform_indices = @transform_0, window_bounds = array<i64: 1, 288>}, {pipeline_mode = #tpu.pipeline_mode<synchronous>, transform_indices = @transform_1, window_bounds = array<i64: 8, 36>}, {transform_indices = @transform_2, window_bounds = array<i64: 1, 4, 342>}, {transform_indices = @transform_3, window_bounds = array<i64: 1, 8, 288>}, {pipeline_mode = #tpu.pipeline_mode<synchronous>, transform_indices = @transform_4, window_bounds = array<i64: 8, 1>}, {pipeline_mode = #tpu.pipeline_mode<synchronous>, transform_indices = @transform_5, window_bounds = array<i64: 8, 1>}]} {
    %c0_i32 = arith.constant 0 : i32
    %0 = arith.cmpi eq, %arg0, %c0_i32 : i32
    %1 = arith.extui %0 : i1 to i32
    %c0_i32_0 = arith.constant 0 : i32
    %2 = arith.cmpi ne, %1, %c0_i32_0 : i32
    scf.if %2 {
      %cst_94 = arith.constant 0.000000e+00 : f32
      %87 = vector.broadcast %cst_94 : f32 to vector<8x1xf32>
      %c0_95 = arith.constant 0 : index
      %c0_96 = arith.constant 0 : index
      %88 = vector.load %arg5[%c0_95, %c0_96] : memref<8x1xf32, #tpu.memory_space<vmem>>, vector<8x1xf32>
      tpu.vector_store %arg5[%c0_95, %c0_96], %87 {strides = array<i32>} : memref<8x1xf32, #tpu.memory_space<vmem>>, vector<8x1xf32>,
      %cst_97 = arith.constant 0.000000e+00 : f32
      %89 = vector.broadcast %cst_97 : f32 to vector<8x1xf32>
      %c0_98 = arith.constant 0 : index
      %c0_99 = arith.constant 0 : index
      %90 = vector.load %arg6[%c0_98, %c0_99] : memref<8x1xf32, #tpu.memory_space<vmem>>, vector<8x1xf32>
      tpu.vector_store %arg6[%c0_98, %c0_99], %89 {strides = array<i32>} : memref<8x1xf32, #tpu.memory_space<vmem>>, vector<8x1xf32>,
    } else {
    }
    %cst = arith.constant 0.000000e+00 : f32
    %3 = vector.broadcast %cst : f32 to vector<8x288xf32>
    %c0 = arith.constant 0 : index
    %c0_1 = arith.constant 0 : index
    %4 = vector.load %arg7[%c0, %c0_1] : memref<8x288xf32, #tpu.memory_space<vmem>>, vector<8x288xf32>
    tpu.vector_store %arg7[%c0, %c0_1], %3 {strides = array<i32>} : memref<8x288xf32, #tpu.memory_space<vmem>>, vector<8x288xf32>,
    %c0_2 = arith.constant 0 : index
    %c0_3 = arith.constant 0 : index
    %c0_4 = arith.constant 0 : index
    %5 = vector.load %arg3[%c0_2, %c0_3, %c0_4] : memref<1x4x342xbf16, #tpu.memory_space<vmem>>, vector<1x4x288xbf16>
    %6 = vector.shape_cast %5 : vector<1x4x288xbf16> to vector<4x288xbf16>
    %c0_5 = arith.constant 0 : index
    %c0_6 = arith.constant 0 : index
    %7 = vector.load %arg2[%c0_5, %c0_6] : memref<8x36xbf16, #tpu.memory_space<vmem>>, vector<8x4xbf16>
    %c0_7 = arith.constant 0 : index
    %c0_8 = arith.constant 0 : index
    %8 = vector.load %arg7[%c0_7, %c0_8] : memref<8x288xf32, #tpu.memory_space<vmem>>, vector<8x288xf32>
    %cst_9 = arith.constant dense<0.000000e+00> : vector<8x288xf32>
    %9 = tpu.matmul %7, %6, %cst_9 {dimension_numbers = #tpu.dot_dimension_numbers<[1], [0], [0], [1], [0, 0, 1, 1], [], []>} : vector<8x4xbf16>, vector<4x288xbf16>, vector<8x288xf32> -> vector<8x288xf32>
    %10 = arith.addf %8, %9 : vector<8x288xf32>
    %c0_10 = arith.constant 0 : index
    %c0_11 = arith.constant 0 : index
    %11 = vector.load %arg7[%c0_10, %c0_11] : memref<8x288xf32, #tpu.memory_space<vmem>>, vector<8x288xf32>
    tpu.vector_store %arg7[%c0_10, %c0_11], %10 {strides = array<i32>} : memref<8x288xf32, #tpu.memory_space<vmem>>, vector<8x288xf32>,
    %c0_12 = arith.constant 0 : index
    %c0_13 = arith.constant 0 : index
    %c1 = arith.constant 1 : index
    %12 = vector.load %arg3[%c0_12, %c0_13, %c1] : memref<1x4x342xbf16, #tpu.memory_space<vmem>>, vector<1x4x288xbf16>
    %13 = vector.shape_cast %12 : vector<1x4x288xbf16> to vector<4x288xbf16>
    %c0_14 = arith.constant 0 : index
    %c4 = arith.constant 4 : index
    %14 = vector.load %arg2[%c0_14, %c4] : memref<8x36xbf16, #tpu.memory_space<vmem>>, vector<8x4xbf16>
    %c0_15 = arith.constant 0 : index
    %c0_16 = arith.constant 0 : index
    %15 = vector.load %arg7[%c0_15, %c0_16] : memref<8x288xf32, #tpu.memory_space<vmem>>, vector<8x288xf32>
    %cst_17 = arith.constant dense<0.000000e+00> : vector<8x288xf32>
    %16 = tpu.matmul %14, %13, %cst_17 {dimension_numbers = #tpu.dot_dimension_numbers<[1], [0], [0], [1], [0, 0, 1, 1], [], []>} : vector<8x4xbf16>, vector<4x288xbf16>, vector<8x288xf32> -> vector<8x288xf32>
    %17 = arith.addf %15, %16 : vector<8x288xf32>
    %c0_18 = arith.constant 0 : index
    %c0_19 = arith.constant 0 : index
    %18 = vector.load %arg7[%c0_18, %c0_19] : memref<8x288xf32, #tpu.memory_space<vmem>>, vector<8x288xf32>
    tpu.vector_store %arg7[%c0_18, %c0_19], %17 {strides = array<i32>} : memref<8x288xf32, #tpu.memory_space<vmem>>, vector<8x288xf32>,
    %c0_20 = arith.constant 0 : index
    %c0_21 = arith.constant 0 : index
    %c2 = arith.constant 2 : index
    %19 = vector.load %arg3[%c0_20, %c0_21, %c2] : memref<1x4x342xbf16, #tpu.memory_space<vmem>>, vector<1x4x288xbf16>
    %20 = vector.shape_cast %19 : vector<1x4x288xbf16> to vector<4x288xbf16>
    %c0_22 = arith.constant 0 : index
    %c8 = arith.constant 8 : index
    %21 = vector.load %arg2[%c0_22, %c8] : memref<8x36xbf16, #tpu.memory_space<vmem>>, vector<8x4xbf16>
    %c0_23 = arith.constant 0 : index
    %c0_24 = arith.constant 0 : index
    %22 = vector.load %arg7[%c0_23, %c0_24] : memref<8x288xf32, #tpu.memory_space<vmem>>, vector<8x288xf32>
    %cst_25 = arith.constant dense<0.000000e+00> : vector<8x288xf32>
    %23 = tpu.matmul %21, %20, %cst_25 {dimension_numbers = #tpu.dot_dimension_numbers<[1], [0], [0], [1], [0, 0, 1, 1], [], []>} : vector<8x4xbf16>, vector<4x288xbf16>, vector<8x288xf32> -> vector<8x288xf32>
    %24 = arith.addf %22, %23 : vector<8x288xf32>
    %c0_26 = arith.constant 0 : index
    %c0_27 = arith.constant 0 : index
    %25 = vector.load %arg7[%c0_26, %c0_27] : memref<8x288xf32, #tpu.memory_space<vmem>>, vector<8x288xf32>
    tpu.vector_store %arg7[%c0_26, %c0_27], %24 {strides = array<i32>} : memref<8x288xf32, #tpu.memory_space<vmem>>, vector<8x288xf32>,
    %c0_28 = arith.constant 0 : index
    %c0_29 = arith.constant 0 : index
    %c18 = arith.constant 18 : index
    %26 = vector.load %arg3[%c0_28, %c0_29, %c18] : memref<1x4x342xbf16, #tpu.memory_space<vmem>>, vector<1x4x288xbf16>
    %27 = vector.shape_cast %26 : vector<1x4x288xbf16> to vector<4x288xbf16>
    %c0_30 = arith.constant 0 : index
    %c12 = arith.constant 12 : index
    %28 = vector.load %arg2[%c0_30, %c12] : memref<8x36xbf16, #tpu.memory_space<vmem>>, vector<8x4xbf16>
    %c0_31 = arith.constant 0 : index
    %c0_32 = arith.constant 0 : index
    %29 = vector.load %arg7[%c0_31, %c0_32] : memref<8x288xf32, #tpu.memory_space<vmem>>, vector<8x288xf32>
    %cst_33 = arith.constant dense<0.000000e+00> : vector<8x288xf32>
    %30 = tpu.matmul %28, %27, %cst_33 {dimension_numbers = #tpu.dot_dimension_numbers<[1], [0], [0], [1], [0, 0, 1, 1], [], []>} : vector<8x4xbf16>, vector<4x288xbf16>, vector<8x288xf32> -> vector<8x288xf32>
    %31 = arith.addf %29, %30 : vector<8x288xf32>
    %c0_34 = arith.constant 0 : index
    %c0_35 = arith.constant 0 : index
    %32 = vector.load %arg7[%c0_34, %c0_35] : memref<8x288xf32, #tpu.memory_space<vmem>>, vector<8x288xf32>
    tpu.vector_store %arg7[%c0_34, %c0_35], %31 {strides = array<i32>} : memref<8x288xf32, #tpu.memory_space<vmem>>, vector<8x288xf32>,
    %c0_36 = arith.constant 0 : index
    %c0_37 = arith.constant 0 : index
    %c19 = arith.constant 19 : index
    %33 = vector.load %arg3[%c0_36, %c0_37, %c19] : memref<1x4x342xbf16, #tpu.memory_space<vmem>>, vector<1x4x288xbf16>
    %34 = vector.shape_cast %33 : vector<1x4x288xbf16> to vector<4x288xbf16>
    %c0_38 = arith.constant 0 : index
    %c16 = arith.constant 16 : index
    %35 = vector.load %arg2[%c0_38, %c16] : memref<8x36xbf16, #tpu.memory_space<vmem>>, vector<8x4xbf16>
    %c0_39 = arith.constant 0 : index
    %c0_40 = arith.constant 0 : index
    %36 = vector.load %arg7[%c0_39, %c0_40] : memref<8x288xf32, #tpu.memory_space<vmem>>, vector<8x288xf32>
    %cst_41 = arith.constant dense<0.000000e+00> : vector<8x288xf32>
    %37 = tpu.matmul %35, %34, %cst_41 {dimension_numbers = #tpu.dot_dimension_numbers<[1], [0], [0], [1], [0, 0, 1, 1], [], []>} : vector<8x4xbf16>, vector<4x288xbf16>, vector<8x288xf32> -> vector<8x288xf32>
    %38 = arith.addf %36, %37 : vector<8x288xf32>
    %c0_42 = arith.constant 0 : index
    %c0_43 = arith.constant 0 : index
    %39 = vector.load %arg7[%c0_42, %c0_43] : memref<8x288xf32, #tpu.memory_space<vmem>>, vector<8x288xf32>
    tpu.vector_store %arg7[%c0_42, %c0_43], %38 {strides = array<i32>} : memref<8x288xf32, #tpu.memory_space<vmem>>, vector<8x288xf32>,
    %c0_44 = arith.constant 0 : index
    %c0_45 = arith.constant 0 : index
    %c20 = arith.constant 20 : index
    %40 = vector.load %arg3[%c0_44, %c0_45, %c20] : memref<1x4x342xbf16, #tpu.memory_space<vmem>>, vector<1x4x288xbf16>
    %41 = vector.shape_cast %40 : vector<1x4x288xbf16> to vector<4x288xbf16>
    %c0_46 = arith.constant 0 : index
    %c20_47 = arith.constant 20 : index
    %42 = vector.load %arg2[%c0_46, %c20_47] : memref<8x36xbf16, #tpu.memory_space<vmem>>, vector<8x4xbf16>
    %c0_48 = arith.constant 0 : index
    %c0_49 = arith.constant 0 : index
    %43 = vector.load %arg7[%c0_48, %c0_49] : memref<8x288xf32, #tpu.memory_space<vmem>>, vector<8x288xf32>
    %cst_50 = arith.constant dense<0.000000e+00> : vector<8x288xf32>
    %44 = tpu.matmul %42, %41, %cst_50 {dimension_numbers = #tpu.dot_dimension_numbers<[1], [0], [0], [1], [0, 0, 1, 1], [], []>} : vector<8x4xbf16>, vector<4x288xbf16>, vector<8x288xf32> -> vector<8x288xf32>
    %45 = arith.addf %43, %44 : vector<8x288xf32>
    %c0_51 = arith.constant 0 : index
    %c0_52 = arith.constant 0 : index
    %46 = vector.load %arg7[%c0_51, %c0_52] : memref<8x288xf32, #tpu.memory_space<vmem>>, vector<8x288xf32>
    tpu.vector_store %arg7[%c0_51, %c0_52], %45 {strides = array<i32>} : memref<8x288xf32, #tpu.memory_space<vmem>>, vector<8x288xf32>,
    %c0_53 = arith.constant 0 : index
    %c0_54 = arith.constant 0 : index
    %c36 = arith.constant 36 : index
    %47 = vector.load %arg3[%c0_53, %c0_54, %c36] : memref<1x4x342xbf16, #tpu.memory_space<vmem>>, vector<1x4x288xbf16>
    %48 = vector.shape_cast %47 : vector<1x4x288xbf16> to vector<4x288xbf16>
    %c0_55 = arith.constant 0 : index
    %c24 = arith.constant 24 : index
    %49 = vector.load %arg2[%c0_55, %c24] : memref<8x36xbf16, #tpu.memory_space<vmem>>, vector<8x4xbf16>
    %c0_56 = arith.constant 0 : index
    %c0_57 = arith.constant 0 : index
    %50 = vector.load %arg7[%c0_56, %c0_57] : memref<8x288xf32, #tpu.memory_space<vmem>>, vector<8x288xf32>
    %cst_58 = arith.constant dense<0.000000e+00> : vector<8x288xf32>
    %51 = tpu.matmul %49, %48, %cst_58 {dimension_numbers = #tpu.dot_dimension_numbers<[1], [0], [0], [1], [0, 0, 1, 1], [], []>} : vector<8x4xbf16>, vector<4x288xbf16>, vector<8x288xf32> -> vector<8x288xf32>
    %52 = arith.addf %50, %51 : vector<8x288xf32>
    %c0_59 = arith.constant 0 : index
    %c0_60 = arith.constant 0 : index
    %53 = vector.load %arg7[%c0_59, %c0_60] : memref<8x288xf32, #tpu.memory_space<vmem>>, vector<8x288xf32>
    tpu.vector_store %arg7[%c0_59, %c0_60], %52 {strides = array<i32>} : memref<8x288xf32, #tpu.memory_space<vmem>>, vector<8x288xf32>,
    %c0_61 = arith.constant 0 : index
    %c0_62 = arith.constant 0 : index
    %c37 = arith.constant 37 : index
    %54 = vector.load %arg3[%c0_61, %c0_62, %c37] : memref<1x4x342xbf16, #tpu.memory_space<vmem>>, vector<1x4x288xbf16>
    %55 = vector.shape_cast %54 : vector<1x4x288xbf16> to vector<4x288xbf16>
    %c0_63 = arith.constant 0 : index
    %c28 = arith.constant 28 : index
    %56 = vector.load %arg2[%c0_63, %c28] : memref<8x36xbf16, #tpu.memory_space<vmem>>, vector<8x4xbf16>
    %c0_64 = arith.constant 0 : index
    %c0_65 = arith.constant 0 : index
    %57 = vector.load %arg7[%c0_64, %c0_65] : memref<8x288xf32, #tpu.memory_space<vmem>>, vector<8x288xf32>
    %cst_66 = arith.constant dense<0.000000e+00> : vector<8x288xf32>
    %58 = tpu.matmul %56, %55, %cst_66 {dimension_numbers = #tpu.dot_dimension_numbers<[1], [0], [0], [1], [0, 0, 1, 1], [], []>} : vector<8x4xbf16>, vector<4x288xbf16>, vector<8x288xf32> -> vector<8x288xf32>
    %59 = arith.addf %57, %58 : vector<8x288xf32>
    %c0_67 = arith.constant 0 : index
    %c0_68 = arith.constant 0 : index
    %60 = vector.load %arg7[%c0_67, %c0_68] : memref<8x288xf32, #tpu.memory_space<vmem>>, vector<8x288xf32>
    tpu.vector_store %arg7[%c0_67, %c0_68], %59 {strides = array<i32>} : memref<8x288xf32, #tpu.memory_space<vmem>>, vector<8x288xf32>,
    %c0_69 = arith.constant 0 : index
    %c0_70 = arith.constant 0 : index
    %c38 = arith.constant 38 : index
    %61 = vector.load %arg3[%c0_69, %c0_70, %c38] : memref<1x4x342xbf16, #tpu.memory_space<vmem>>, vector<1x4x288xbf16>
    %62 = vector.shape_cast %61 : vector<1x4x288xbf16> to vector<4x288xbf16>
    %c0_71 = arith.constant 0 : index
    %c32 = arith.constant 32 : index
    %63 = vector.load %arg2[%c0_71, %c32] : memref<8x36xbf16, #tpu.memory_space<vmem>>, vector<8x4xbf16>
    %c0_72 = arith.constant 0 : index
    %c0_73 = arith.constant 0 : index
    %64 = vector.load %arg7[%c0_72, %c0_73] : memref<8x288xf32, #tpu.memory_space<vmem>>, vector<8x288xf32>
    %cst_74 = arith.constant dense<0.000000e+00> : vector<8x288xf32>
    %65 = tpu.matmul %63, %62, %cst_74 {dimension_numbers = #tpu.dot_dimension_numbers<[1], [0], [0], [1], [0, 0, 1, 1], [], []>} : vector<8x4xbf16>, vector<4x288xbf16>, vector<8x288xf32> -> vector<8x288xf32>
    %66 = arith.addf %64, %65 : vector<8x288xf32>
    %c0_75 = arith.constant 0 : index
    %c0_76 = arith.constant 0 : index
    %67 = vector.load %arg7[%c0_75, %c0_76] : memref<8x288xf32, #tpu.memory_space<vmem>>, vector<8x288xf32>
    tpu.vector_store %arg7[%c0_75, %c0_76], %66 {strides = array<i32>} : memref<8x288xf32, #tpu.memory_space<vmem>>, vector<8x288xf32>,
    %c0_77 = arith.constant 0 : index
    %c0_78 = arith.constant 0 : index
    %68 = vector.load %arg7[%c0_77, %c0_78] : memref<8x288xf32, #tpu.memory_space<vmem>>, vector<8x288xf32>
    %c0_79 = arith.constant 0 : index
    %c0_80 = arith.constant 0 : index
    %69 = vector.load %arg1[%c0_79, %c0_80] : memref<1x288xf32, #tpu.memory_space<vmem>>, vector<1x288xf32>
    %70 = vector.broadcast %69 : vector<1x288xf32> to vector<8x288xf32>
    %71 = arith.mulf %68, %70 : vector<8x288xf32>
    %c0_81 = arith.constant 0 : index
    %c0_82 = arith.constant 0 : index
    %72 = vector.load %arg5[%c0_81, %c0_82] : memref<8x1xf32, #tpu.memory_space<vmem>>, vector<8x1xf32>
    %cst_83 = arith.constant dense<0.000000e+00> : vector<8xf32>
    %73 = vector.multi_reduction <add>, %71, %cst_83 [1] : vector<8x288xf32> to vector<8xf32>
    %74 = vector.shape_cast %73 : vector<8xf32> to vector<8x1xf32>
    %75 = arith.addf %72, %74 : vector<8x1xf32>
    %c0_84 = arith.constant 0 : index
    %c0_85 = arith.constant 0 : index
    %76 = vector.load %arg5[%c0_84, %c0_85] : memref<8x1xf32, #tpu.memory_space<vmem>>, vector<8x1xf32>
    tpu.vector_store %arg5[%c0_84, %c0_85], %75 {strides = array<i32>} : memref<8x1xf32, #tpu.memory_space<vmem>>, vector<8x1xf32>,
    %c0_86 = arith.constant 0 : index
    %c0_87 = arith.constant 0 : index
    %77 = vector.load %arg6[%c0_86, %c0_87] : memref<8x1xf32, #tpu.memory_space<vmem>>, vector<8x1xf32>
    %78 = arith.mulf %71, %68 : vector<8x288xf32>
    %cst_88 = arith.constant dense<0.000000e+00> : vector<8xf32>
    %79 = vector.multi_reduction <add>, %78, %cst_88 [1] : vector<8x288xf32> to vector<8xf32>
    %80 = vector.shape_cast %79 : vector<8xf32> to vector<8x1xf32>
    %81 = arith.addf %77, %80 : vector<8x1xf32>
    %c0_89 = arith.constant 0 : index
    %c0_90 = arith.constant 0 : index
    %82 = vector.load %arg6[%c0_89, %c0_90] : memref<8x1xf32, #tpu.memory_space<vmem>>, vector<8x1xf32>
    tpu.vector_store %arg6[%c0_89, %c0_90], %81 {strides = array<i32>} : memref<8x1xf32, #tpu.memory_space<vmem>>, vector<8x1xf32>,
    %83 = arith.truncf %68 : vector<8x288xf32> to vector<8x288xbf16>
    %c0_91 = arith.constant 0 : index
    %c0_92 = arith.constant 0 : index
    %c0_93 = arith.constant 0 : index
    %84 = vector.load %arg4[%c0_91, %c0_92, %c0_93] : memref<1x8x288xbf16, #tpu.memory_space<vmem>>, vector<1x8x288xbf16>
    %85 = vector.shape_cast %84 : vector<1x8x288xbf16> to vector<8x288xbf16>
    %86 = vector.shape_cast %83 : vector<8x288xbf16> to vector<1x8x288xbf16>
    tpu.vector_store %arg4[%c0_91, %c0_92, %c0_93], %86 {strides = array<i32>} : memref<1x8x288xbf16, #tpu.memory_space<vmem>>, vector<1x8x288xbf16>,
    return
  }
  func.func @transform_0(%arg0: i32) -> (i32, i32) {
    %c0_i32 = arith.constant 0 : i32
    %c0_i32_0 = arith.constant 0 : i32
    %c0_i32_1 = arith.constant 0 : i32
    return %c0_i32, %c0_i32_0 : i32, i32
  }
  func.func @transform_1(%arg0: i32) -> (i32, i32) {
    %c0_i32 = arith.constant 0 : i32
    %c0_i32_0 = arith.constant 0 : i32
    %c0_i32_1 = arith.constant 0 : i32
    return %c0_i32, %c0_i32_0 : i32, i32
  }
  func.func @transform_2(%arg0: i32) -> (i32, i32, i32) {
    %c0_i32 = arith.constant 0 : i32
    %c0_i32_0 = arith.constant 0 : i32
    %c0_i32_1 = arith.constant 0 : i32
    return %arg0, %c0_i32, %c0_i32_0 : i32, i32, i32
  }
  func.func @transform_3(%arg0: i32) -> (i32, i32, i32) {
    %c0_i32 = arith.constant 0 : i32
    %c0_i32_0 = arith.constant 0 : i32
    %c0_i32_1 = arith.constant 0 : i32
    return %arg0, %c0_i32, %c0_i32_0 : i32, i32, i32
  }
  func.func @transform_4(%arg0: i32) -> (i32, i32) {
    %c0_i32 = arith.constant 0 : i32
    %c0_i32_0 = arith.constant 0 : i32
    %c0_i32_1 = arith.constant 0 : i32
    return %c0_i32, %c0_i32_0 : i32, i32
  }
  func.func @transform_5(%arg0: i32) -> (i32, i32) {
    %c0_i32 = arith.constant 0 : i32
    %c0_i32_0 = arith.constant 0 : i32
    %c0_i32_1 = arith.constant 0 : i32
    return %c0_i32, %c0_i32_0 : i32, i32
  }
}

module attributes {stable_mosaic.version = 11 : i64} {
  func.func @_bn_relu_kernel(%arg0: i32, %arg1: memref<1x8x16x18xbf16, #tpu.memory_space<vmem>>, %arg2: memref<8x1x1xf32, #tpu.memory_space<vmem>>, %arg3: memref<8x1x1xf32, #tpu.memory_space<vmem>>, %arg4: memref<1x8x16x16xf32, #tpu.memory_space<vmem>>) attributes {dimension_semantics = [#tpu.dimension_semantics<parallel>], iteration_bounds = array<i64: 2>, scalar_prefetch = 0 : i64, scratch_operands = 0 : i64, tpu.core_type = #tpu.core_type<tc>, window_params = [{transform_indices = @transform_0, window_bounds = array<i64: 1, 8, 16, 18>}, {pipeline_mode = #tpu.pipeline_mode<synchronous>, transform_indices = @transform_1, window_bounds = array<i64: 8, 1, 1>}, {pipeline_mode = #tpu.pipeline_mode<synchronous>, transform_indices = @transform_2, window_bounds = array<i64: 8, 1, 1>}, {transform_indices = @transform_3, window_bounds = array<i64: 1, 8, 16, 16>}]} {
    %c0 = arith.constant 0 : index
    %c0_0 = arith.constant 0 : index
    %c0_1 = arith.constant 0 : index
    %c0_2 = arith.constant 0 : index
    %0 = vector.load %arg1[%c0, %c0_0, %c0_1, %c0_2] : memref<1x8x16x18xbf16, #tpu.memory_space<vmem>>, vector<1x8x16x16xbf16>
    %1 = vector.shape_cast %0 : vector<1x8x16x16xbf16> to vector<8x16x16xbf16>
    %2 = arith.extf %1 : vector<8x16x16xbf16> to vector<8x16x16xf32>
    %c0_3 = arith.constant 0 : index
    %c0_4 = arith.constant 0 : index
    %c0_5 = arith.constant 0 : index
    %3 = vector.load %arg2[%c0_3, %c0_4, %c0_5] : memref<8x1x1xf32, #tpu.memory_space<vmem>>, vector<8x1x1xf32>
    %4 = vector.broadcast %3 : vector<8x1x1xf32> to vector<8x16x16xf32>
    %5 = arith.mulf %2, %4 : vector<8x16x16xf32>
    %c0_6 = arith.constant 0 : index
    %c0_7 = arith.constant 0 : index
    %c0_8 = arith.constant 0 : index
    %6 = vector.load %arg3[%c0_6, %c0_7, %c0_8] : memref<8x1x1xf32, #tpu.memory_space<vmem>>, vector<8x1x1xf32>
    %7 = vector.broadcast %6 : vector<8x1x1xf32> to vector<8x16x16xf32>
    %8 = arith.addf %5, %7 : vector<8x16x16xf32>
    %cst = arith.constant 0.000000e+00 : f32
    %9 = vector.broadcast %cst : f32 to vector<8x16x16xf32>
    %10 = arith.maximumf %8, %9 : vector<8x16x16xf32>
    %c0_9 = arith.constant 0 : index
    %c0_10 = arith.constant 0 : index
    %c0_11 = arith.constant 0 : index
    %c0_12 = arith.constant 0 : index
    %11 = vector.load %arg4[%c0_9, %c0_10, %c0_11, %c0_12] : memref<1x8x16x16xf32, #tpu.memory_space<vmem>>, vector<1x8x16x16xf32>
    %12 = vector.shape_cast %11 : vector<1x8x16x16xf32> to vector<8x16x16xf32>
    %13 = vector.shape_cast %10 : vector<8x16x16xf32> to vector<1x8x16x16xf32>
    tpu.vector_store %arg4[%c0_9, %c0_10, %c0_11, %c0_12], %13 {strides = array<i32>} : memref<1x8x16x16xf32, #tpu.memory_space<vmem>>, vector<1x8x16x16xf32>,
    return
  }
  func.func @transform_0(%arg0: i32) -> (i32, i32, i32, i32) {
    %c0_i32 = arith.constant 0 : i32
    %c0_i32_0 = arith.constant 0 : i32
    %c0_i32_1 = arith.constant 0 : i32
    %c0_i32_2 = arith.constant 0 : i32
    return %arg0, %c0_i32, %c0_i32_0, %c0_i32_1 : i32, i32, i32, i32
  }
  func.func @transform_1(%arg0: i32) -> (i32, i32, i32) {
    %c0_i32 = arith.constant 0 : i32
    %c0_i32_0 = arith.constant 0 : i32
    %c0_i32_1 = arith.constant 0 : i32
    %c0_i32_2 = arith.constant 0 : i32
    return %c0_i32, %c0_i32_0, %c0_i32_1 : i32, i32, i32
  }
  func.func @transform_2(%arg0: i32) -> (i32, i32, i32) {
    %c0_i32 = arith.constant 0 : i32
    %c0_i32_0 = arith.constant 0 : i32
    %c0_i32_1 = arith.constant 0 : i32
    %c0_i32_2 = arith.constant 0 : i32
    return %c0_i32, %c0_i32_0, %c0_i32_1 : i32, i32, i32
  }
  func.func @transform_3(%arg0: i32) -> (i32, i32, i32, i32) {
    %c0_i32 = arith.constant 0 : i32
    %c0_i32_0 = arith.constant 0 : i32
    %c0_i32_1 = arith.constant 0 : i32
    %c0_i32_2 = arith.constant 0 : i32
    return %arg0, %c0_i32, %c0_i32_0, %c0_i32_1 : i32, i32, i32, i32
  }
}

</mosaic_0001>

<llo_original>
// kernel: conv_block_forward.3
$region0: #{conv_block_forward.3}
  #allocation0 [shape = 'u32[]', space=smem, size = 0x4, offset = 0x4, fixed_abs, tag = 'smem constant byte address 0x4 - core index']
  #allocation1 [shape = 'u32[144,128]{1,0:T(1,128)}', space=vmem, size = 0x12000, scoped, tag = 'internal scratch']
  %s0 = inlined_call_operand.hbm [shape: bf16[2,8,16,18], index: 0, kind: input, shape index: {}]
  %s1 = inlined_call_operand.hbm [shape: f32[8,1,1], index: 1, kind: input, shape index: {}]
  %s2 = inlined_call_operand.hbm [shape: f32[8,1,1], index: 2, kind: input, shape index: {}]
  %s3 = inlined_call_operand.hbm [shape: f32[2,8,16,16], index: 3, kind: output, shape index: {}]
  %s4 = sld [smem:[#allocation0]]
  $region57: #{conv_block_forward.3} parent=0
    _
  %s6 = ssub.s32 1, %s4
  %s7 = scalar_select 0, %s6, %s4
  $region1: #{conv_block_forward.3} parent=0
    #allocation2 [shape = 'u8[65536]{0}', space=vmem, size = 0x10000, scoped, tag = 'input window, operand 0']
    #allocation3 [shape = 's32[2]{0}', space=sflag, size = 0x8, scoped, tag = 'scoped memory for conv_block_forward.3']
    #allocation4 [shape = 's32[2]{0}', space=sflag, size = 0x8, scoped, tag = 'scoped memory for conv_block_forward.3']
    #allocation5 [shape = 'u8[4096]{0}', space=vmem, size = 0x1000, scoped, tag = 'input window, operand 1, single buffered']
    #allocation6 [shape = 's32[1]{0}', space=sflag, size = 0x4, scoped, tag = 'scoped memory for conv_block_forward.3']
    #allocation7 [shape = 'u8[4096]{0}', space=vmem, size = 0x1000, scoped, tag = 'input window, operand 2, single buffered']
    #allocation8 [shape = 'u8[131072]{0}', space=vmem, size = 0x20000, scoped, tag = 'output window, operand 0']
    %8 = vsyncpa [#allocation3], 0
    %s9 = scalar_lea.sflag [#allocation3], 1
    %10 = vsyncpa %s9, 0
    %11 = vsyncpa [#allocation6], 0
    %12 = vsyncpa [#allocation4], 0
    %s13 = scalar_lea.sflag [#allocation4], 1
    %14 = vsyncpa %s13, 0
    loop: start=0, step=1, limit=4
    $region2: #{conv_block_forward.3} parent=1 // loop_pre_header
      _
    $region3: #{conv_block_forward.3} parent=1 // loop_header
      %s16 = sphi 0, %s20
      %p17 = scmp.ge.s32.totalorder %s16, 4
      %s26 = sphi 0, %s28
      %s29 = sphi 0, %s26
      %s30 = sphi 0, %s29
      %s46 = sphi 0, %s30
      %s50 = sphi 0, %s50
      %s52 = sphi 0, %s50
      %s53 = sphi 0, %s52
      %s67 = sphi 0, %s53
      %s71 = sphi 0, %s71
      %s73 = sphi 0, %s71
      %s74 = sphi 0, %s73
      %s88 = sphi 0, %s74
      %s94 = sphi 0, %s96
      %s97 = sphi 0, %s94
      %s98 = sphi 0, %s97
      %s114 = sphi 0, %s98
    $region4: #{conv_block_forward.3} parent=1 // loop_header_branch
      %19 = sbr.rel (%p17) target = $region8
    $region5: #{conv_block_forward.3} parent=1 // loop_body
      %s21 = ssub.s32 %s16, 1
      %s22 = ssub.s32 %s16, 2
      %s23 = sadd.s32 %s16, 1
      %s24 = ssub.s32 %s16, %s23
      %p25 = scmp.eq.s32.totalorder %s24, 0
      %s27 = sadd.s32 %s26, 1
      %s28 = scalar_select %p25, %s26, %s27
      %p31 = pneg %p25
      %p32 = scmp.eq.s32.totalorder %s16, 1
      %p33 = por %p31, %p32
      %p34 = scmp.ne.s32.totalorder %s26, %s29
      %p35 = scmp.eq.s32.totalorder %s16, 0
      %p36 = por %p34, %p35
      %p37 = scmp.ne.s32.totalorder %s26, %s29
      %p38 = scmp.eq.s32.totalorder %s21, 1
      %p39 = por %p37, %p38
      %p40 = scmp.ne.s32.totalorder %s29, %s30
      %p41 = scmp.eq.s32.totalorder %s21, 0
      %p42 = por %p40, %p41
      %p43 = scmp.ne.s32.totalorder %s29, %s30
      %p44 = scmp.eq.s32.totalorder %s22, 1
      %p45 = por %p43, %p44
      %p47 = scmp.ne.s32.totalorder %s30, %s46
      %p48 = scmp.eq.s32.totalorder %s22, 0
      %p49 = por %p47, %p48
      %s51 = sadd.s32 %s50, 1
      %p54 = scmp.eq.s32.totalorder %s16, 1
      %p55 = scmp.ne.s32.totalorder %s50, %s52
      %p56 = scmp.eq.s32.totalorder %s16, 0
      %p57 = por %p55, %p56
      %p58 = scmp.ne.s32.totalorder %s50, %s52
      %p59 = scmp.eq.s32.totalorder %s21, 1
      %p60 = por %p58, %p59
      %p61 = scmp.ne.s32.totalorder %s52, %s53
      %p62 = scmp.eq.s32.totalorder %s21, 0
      %p63 = por %p61, %p62
      %p64 = scmp.ne.s32.totalorder %s52, %s53
      %p65 = scmp.eq.s32.totalorder %s22, 1
      %p66 = por %p64, %p65
      %p68 = scmp.ne.s32.totalorder %s53, %s67
      %p69 = scmp.eq.s32.totalorder %s22, 0
      %p70 = por %p68, %p69
      %s72 = sadd.s32 %s71, 1
      %p75 = scmp.eq.s32.totalorder %s16, 1
      %p76 = scmp.ne.s32.totalorder %s71, %s73
      %p77 = scmp.eq.s32.totalorder %s16, 0
      %p78 = por %p76, %p77
      %p79 = scmp.ne.s32.totalorder %s71, %s73
      %p80 = scmp.eq.s32.totalorder %s21, 1
      %p81 = por %p79, %p80
      %p82 = scmp.ne.s32.totalorder %s73, %s74
      %p83 = scmp.eq.s32.totalorder %s21, 0
      %p84 = por %p82, %p83
      %p85 = scmp.ne.s32.totalorder %s73, %s74
      %p86 = scmp.eq.s32.totalorder %s22, 1
      %p87 = por %p85, %p86
      %p89 = scmp.ne.s32.totalorder %s74, %s88
      %p90 = scmp.eq.s32.totalorder %s22, 0
      %p91 = por %p89, %p90
      %s92 = ssub.s32 %s16, %s23
      %p93 = scmp.eq.s32.totalorder %s92, 0
      %s95 = sadd.s32 %s94, 1
      %s96 = scalar_select %p93, %s94, %s95
      %p99 = pneg %p93
      %p100 = scmp.eq.s32.totalorder %s16, 1
      %p101 = por %p99, %p100
      %p102 = scmp.ne.s32.totalorder %s94, %s97
      %p103 = scmp.eq.s32.totalorder %s16, 0
      %p104 = por %p102, %p103
      %p105 = scmp.ne.s32.totalorder %s94, %s97
      %p106 = scmp.eq.s32.totalorder %s21, 1
      %p107 = por %p105, %p106
      %p108 = scmp.ne.s32.totalorder %s97, %s98
      %p109 = scmp.eq.s32.totalorder %s21, 0
      %p110 = por %p108, %p109
      %p111 = scmp.ne.s32.totalorder %s97, %s98
      %p112 = scmp.eq.s32.totalorder %s22, 1
      %p113 = por %p111, %p112
      %p115 = scmp.ne.s32.totalorder %s98, %s114
      %p116 = scmp.eq.s32.totalorder %s22, 0
      %p117 = por %p115, %p116
      %p118 = scmp.le.s32.totalorder 1, %s16
      %p119 = scmp.lt.s32.totalorder %s16, 3
      %p120 = pnand %p118, %p119
      %p121 = pneg %p120
      // Predicated region
      $region9: #{conv_block_forward.3} parent=5 // pred_check
        _
      $region10: #{conv_block_forward.3} parent=5 // pred_check_branch
        %123 = sbr.rel (%p120) target = $region12
      $region11: #{conv_block_forward.3} parent=5 // pred_region
        %s124 = ssub.s32 %s16, 1
        // Predicated region
        $region13: #{conv_block_forward.3} parent=11 // pred_check
          %p125 = pneg %p63
        $region14: #{conv_block_forward.3} parent=11 // pred_check_branch
          %127 = sbr.rel (%p125) target = $region16
        $region15: #{conv_block_forward.3} parent=11 // pred_region
          %s129 = ssub.s32 128, 128
          %130 = vsyncadd [#allocation6], %s129
          %s131 = sshll.u32 [#allocation5], 4
          %s132 = int_to_ptr.vmem [resolvable:$true] %s131
          %137 = dma.hbm_to_vmem [thread:$0]  %s1, 128, %s132, [#allocation6], 16, 16, 1
        $region16: #{conv_block_forward.3} parent=11 // pred_fallthru
          _
        // Predicated region
        $region17: #{conv_block_forward.3} parent=11 // pred_check
          %p138 = pneg %p84
        $region18: #{conv_block_forward.3} parent=11 // pred_check_branch
          %140 = sbr.rel (%p138) target = $region20
        $region19: #{conv_block_forward.3} parent=11 // pred_region
          %s142 = ssub.s32 128, 128
          %143 = vsyncadd [#allocation6], %s142
          %s144 = sshll.u32 [#allocation7], 4
          %s145 = int_to_ptr.vmem [resolvable:$true] %s144
          %150 = dma.hbm_to_vmem [thread:$0]  %s2, 128, %s145, [#allocation6], 16, 16, 1
        $region20: #{conv_block_forward.3} parent=11 // pred_fallthru
          _
      $region12: #{conv_block_forward.3} parent=5 // pred_fallthru
        _
      %p151 = scmp.lt.s32.totalorder %s16, 2
      // Predicated region
      $region21: #{conv_block_forward.3} parent=5 // pred_check
        %p152 = pneg %p151
      $region22: #{conv_block_forward.3} parent=5 // pred_check_branch
        %154 = sbr.rel (%p152) target = $region24
      $region23: #{conv_block_forward.3} parent=5 // pred_region
        // Predicated region
        $region25: #{conv_block_forward.3} parent=23 // pred_check
          %p155 = pneg %p36
        $region26: #{conv_block_forward.3} parent=23 // pred_check_branch
          %157 = sbr.rel (%p155) target = $region28
        $region27: #{conv_block_forward.3} parent=23 // pred_region
          %s158 = sand.u32 %s26, 1
          %s159 = scalar_lea.sflag [#allocation3], %s158
          %s160 = sand.u32 %s26, 1
          %s161 = smul.addr %s160, 64
          %s162 = scalar_lea.vmem [#allocation2], %s161
          %s164 = ssub.s32 1024, 1024
          %165 = vsyncadd %s159, %s164
          %s166 = smul.addr %s16, 16
          %s167 = smul.addr %s166, 64
          %s168 = scalar_lea.hbm %s0, %s167
          %s169 = sshll.u32 %s162, 4
          %s170 = int_to_ptr.vmem [resolvable:$true] %s169
          %175 = dma.hbm_to_vmem [thread:$0]  %s168, 1024, %s170, %s159, 64, 64, 4
        $region28: #{conv_block_forward.3} parent=23 // pred_fallthru
          _
      $region24: #{conv_block_forward.3} parent=5 // pred_fallthru
        _
      %p176 = scmp.le.s32.totalorder 1, %s16
      %p177 = scmp.lt.s32.totalorder %s16, 3
      %p178 = pnand %p176, %p177
      %p179 = pneg %p178
      // Predicated region
      $region29: #{conv_block_forward.3} parent=5 // pred_check
        _
      $region30: #{conv_block_forward.3} parent=5 // pred_check_branch
        %181 = sbr.rel (%p178) target = $region32
      $region31: #{conv_block_forward.3} parent=5 // pred_region
        %s182 = ssub.s32 %s16, 1
        %s183 = sand.u32 %s29, 1
        %s184 = scalar_lea.sflag [#allocation3], %s183
        %s185 = sand.u32 %s29, 1
        %s186 = smul.addr %s185, 64
        %s187 = scalar_lea.vmem [#allocation2], %s186
        // Predicated region
        $region33: #{conv_block_forward.3} parent=31 // pred_check
          %p188 = pneg %p42
        $region34: #{conv_block_forward.3} parent=31 // pred_check_branch
          %190 = sbr.rel (%p188) target = $region36
        $region35: #{conv_block_forward.3} parent=31 // pred_region
          %191 = dma.done %s184, 1024
        $region36: #{conv_block_forward.3} parent=31 // pred_fallthru
          _
        // Predicated region
        $region37: #{conv_block_forward.3} parent=31 // pred_check
          %p192 = pneg %p63
        $region38: #{conv_block_forward.3} parent=31 // pred_check_branch
          %194 = sbr.rel (%p192) target = $region40
        $region39: #{conv_block_forward.3} parent=31 // pred_region
          %195 = dma.done [#allocation6], 128
        $region40: #{conv_block_forward.3} parent=31 // pred_fallthru
          _
        // Predicated region
        $region41: #{conv_block_forward.3} parent=31 // pred_check
          %p196 = pneg %p84
        $region42: #{conv_block_forward.3} parent=31 // pred_check_branch
          %198 = sbr.rel (%p196) target = $region44
        $region43: #{conv_block_forward.3} parent=31 // pred_region
          %199 = dma.done [#allocation6], 128
        $region44: #{conv_block_forward.3} parent=31 // pred_fallthru
          _
        %s200 = sand.u32 %s29, 1
        %s201 = scalar_lea.sflag [#allocation3], %s200
        %s202 = sand.u32 %s29, 1
        %s203 = smul.addr %s202, 64
        %s204 = scalar_lea.vmem [#allocation2], %s203
        %p205 = pneg %p42
        %p206 = pneg %p39
        %p207 = pneg %p63
        %p208 = pneg %p60
        %p209 = pneg %p84
        %p210 = pneg %p81
        %p211 = pneg %p110
        %p212 = pneg %p107
        %s213 = sand.u32 %s97, 1
        %s214 = scalar_lea.sflag [#allocation4], %s213
        %s215 = sand.u32 %s97, 1
        %s216 = smul.addr %s215, 128
        %s217 = scalar_lea.vmem [#allocation8], %s216
        %v218 = vld [vmem:[%s187] sm:$0xf]
        %v219 = vld [vmem:[%s187 + $0x4] sm:$0xf]
        %v220 = vld [vmem:[%s187 + $0x8] sm:$0xf]
        %v221 = vld [vmem:[%s187 + $0xc] sm:$0xf]
        %v222 = vld [vmem:[%s187 + $0x10] sm:$0xf]
        %v223 = vld [vmem:[%s187 + $0x14] sm:$0xf]
        %v224 = vld [vmem:[%s187 + $0x18] sm:$0xf]
        %v225 = vld [vmem:[%s187 + $0x1c] sm:$0xf]
        %v226 = vld [vmem:[%s187 + $0x20] sm:$0xf]
        %v227 = vld [vmem:[%s187 + $0x24] sm:$0xf]
        %v228 = vld [vmem:[%s187 + $0x28] sm:$0xf]
        %v229 = vld [vmem:[%s187 + $0x2c] sm:$0xf]
        %v230 = vld [vmem:[%s187 + $0x30] sm:$0xf]
        %v231 = vld [vmem:[%s187 + $0x34] sm:$0xf]
        %v232 = vld [vmem:[%s187 + $0x38] sm:$0xf]
        %v233 = vld [vmem:[%s187 + $0x3c] sm:$0xf]
        %v234 = vunpack.c.l.bf16 %v218
        %v235 = vunpack.c.l.bf16 %v219
        %v236 = vunpack.c.l.bf16 %v220
        %v237 = vunpack.c.l.bf16 %v221
        %v238 = vunpack.c.l.bf16 %v222
        %v239 = vunpack.c.l.bf16 %v223
        %v240 = vunpack.c.l.bf16 %v224
        %v241 = vunpack.c.l.bf16 %v225
        %v242 = vunpack.c.l.bf16 %v226
        %v243 = vunpack.c.l.bf16 %v227
        %v244 = vunpack.c.l.bf16 %v228
        %v245 = vunpack.c.l.bf16 %v229
        %v246 = vunpack.c.l.bf16 %v230
        %v247 = vunpack.c.l.bf16 %v231
        %v248 = vunpack.c.l.bf16 %v232
        %v249 = vunpack.c.l.bf16 %v233
        %v250 = vld [vmem:[#allocation5] sm:$0x1]
        %v251 = vld [vmem:[#allocation5 + $0x1] sm:$0x1]
        %v252 = vld [vmem:[#allocation5 + $0x2] sm:$0x1]
        %v253 = vld [vmem:[#allocation5 + $0x3] sm:$0x1]
        %v254 = vld [vmem:[#allocation5 + $0x4] sm:$0x1]
        %v255 = vld [vmem:[#allocation5 + $0x5] sm:$0x1]
        %v256 = vld [vmem:[#allocation5 + $0x6] sm:$0x1]
        %v257 = vld [vmem:[#allocation5 + $0x7] sm:$0x1]
        %v266 = vlaneseq
        %v267 = vshrl.u32 %v266, 7
        %v268 = vsub.s32 0, %v267
        %v269 = vrot.slane %v250, %v268
        %v270 = vlaneseq
        %v271 = vshrl.u32 %v270, 7
        %v272 = vsub.s32 0, %v271
        %v273 = vrot.slane %v251, %v272
        %v274 = vlaneseq
        %v275 = vshrl.u32 %v274, 7
        %v276 = vsub.s32 0, %v275
        %v277 = vrot.slane %v252, %v276
        %v278 = vlaneseq
        %v279 = vshrl.u32 %v278, 7
        %v280 = vsub.s32 0, %v279
        %v281 = vrot.slane %v253, %v280
        %v282 = vlaneseq
        %v283 = vshrl.u32 %v282, 7
        %v284 = vsub.s32 0, %v283
        %v285 = vrot.slane %v254, %v284
        %v286 = vlaneseq
        %v287 = vshrl.u32 %v286, 7
        %v288 = vsub.s32 0, %v287
        %v289 = vrot.slane %v255, %v288
        %v290 = vlaneseq
        %v291 = vshrl.u32 %v290, 7
        %v292 = vsub.s32 0, %v291
        %v293 = vrot.slane %v256, %v292
        %v294 = vlaneseq
        %v295 = vshrl.u32 %v294, 7
        %v296 = vsub.s32 0, %v295
        %v297 = vrot.slane %v257, %v296
        %298 = vset.pattern.permute.xlu0 0
        %299 = vperm.xlu0 %298, %v269
        %v300 = vpop.permute.xlu0 %299
        %302 = vset.pattern.permute.xlu0 0
        %303 = vperm.xlu0 %302, %v273
        %v304 = vpop.permute.xlu0 %303
        %306 = vset.pattern.permute.xlu0 0
        %307 = vperm.xlu0 %306, %v277
        %v308 = vpop.permute.xlu0 %307
        %310 = vset.pattern.permute.xlu0 0
        %311 = vperm.xlu0 %310, %v281
        %v312 = vpop.permute.xlu0 %311
        %314 = vset.pattern.permute.xlu0 0
        %315 = vperm.xlu0 %314, %v285
        %v316 = vpop.permute.xlu0 %315
        %318 = vset.pattern.permute.xlu0 0
        %319 = vperm.xlu0 %318, %v289
        %v320 = vpop.permute.xlu0 %319
        %322 = vset.pattern.permute.xlu0 0
        %323 = vperm.xlu0 %322, %v293
        %v324 = vpop.permute.xlu0 %323
        %326 = vset.pattern.permute.xlu0 0
        %327 = vperm.xlu0 %326, %v297
        %v328 = vpop.permute.xlu0 %327
        %v330 = vmul.f32 %v234, %v300
        %v331 = vmul.f32 %v235, %v300
        %v332 = vmul.f32 %v236, %v304
        %v333 = vmul.f32 %v237, %v304
        %v334 = vmul.f32 %v238, %v308
        %v335 = vmul.f32 %v239, %v308
        %v336 = vmul.f32 %v240, %v312
        %v337 = vmul.f32 %v241, %v312
        %v338 = vmul.f32 %v242, %v316
        %v339 = vmul.f32 %v243, %v316
        %v340 = vmul.f32 %v244, %v320
        %v341 = vmul.f32 %v245, %v320
        %v342 = vmul.f32 %v246, %v324
        %v343 = vmul.f32 %v247, %v324
        %v344 = vmul.f32 %v248, %v328
        %v345 = vmul.f32 %v249, %v328
        %v346 = vld [vmem:[#allocation7] sm:$0x1]
        %v347 = vld [vmem:[#allocation7 + $0x1] sm:$0x1]
        %v348 = vld [vmem:[#allocation7 + $0x2] sm:$0x1]
        %v349 = vld [vmem:[#allocation7 + $0x3] sm:$0x1]
        %v350 = vld [vmem:[#allocation7 + $0x4] sm:$0x1]
        %v351 = vld [vmem:[#allocation7 + $0x5] sm:$0x1]
        %v352 = vld [vmem:[#allocation7 + $0x6] sm:$0x1]
        %v353 = vld [vmem:[#allocation7 + $0x7] sm:$0x1]
        %v362 = vlaneseq
        %v363 = vshrl.u32 %v362, 7
        %v364 = vsub.s32 0, %v363
        %v365 = vrot.slane %v346, %v364
        %v366 = vlaneseq
        %v367 = vshrl.u32 %v366, 7
        %v368 = vsub.s32 0, %v367
        %v369 = vrot.slane %v347, %v368
        %v370 = vlaneseq
        %v371 = vshrl.u32 %v370, 7
        %v372 = vsub.s32 0, %v371
        %v373 = vrot.slane %v348, %v372
        %v374 = vlaneseq
        %v375 = vshrl.u32 %v374, 7
        %v376 = vsub.s32 0, %v375
        %v377 = vrot.slane %v349, %v376
        %v378 = vlaneseq
        %v379 = vshrl.u32 %v378, 7
        %v380 = vsub.s32 0, %v379
        %v381 = vrot.slane %v350, %v380
        %v382 = vlaneseq
        %v383 = vshrl.u32 %v382, 7
        %v384 = vsub.s32 0, %v383
        %v385 = vrot.slane %v351, %v384
        %v386 = vlaneseq
        %v387 = vshrl.u32 %v386, 7
        %v388 = vsub.s32 0, %v387
        %v389 = vrot.slane %v352, %v388
        %v390 = vlaneseq
        %v391 = vshrl.u32 %v390, 7
        %v392 = vsub.s32 0, %v391
        %v393 = vrot.slane %v353, %v392
        %394 = vset.pattern.permute.xlu0 0
        %395 = vperm.xlu0 %394, %v365
        %v396 = vpop.permute.xlu0 %395
        %398 = vset.pattern.permute.xlu0 0
        %399 = vperm.xlu0 %398, %v369
        %v400 = vpop.permute.xlu0 %399
        %402 = vset.pattern.permute.xlu0 0
        %403 = vperm.xlu0 %402, %v373
        %v404 = vpop.permute.xlu0 %403
        %406 = vset.pattern.permute.xlu0 0
        %407 = vperm.xlu0 %406, %v377
        %v408 = vpop.permute.xlu0 %407
        %410 = vset.pattern.permute.xlu0 0
        %411 = vperm.xlu0 %410, %v381
        %v412 = vpop.permute.xlu0 %411
        %414 = vset.pattern.permute.xlu0 0
        %415 = vperm.xlu0 %414, %v385
        %v416 = vpop.permute.xlu0 %415
        %418 = vset.pattern.permute.xlu0 0
        %419 = vperm.xlu0 %418, %v389
        %v420 = vpop.permute.xlu0 %419
        %422 = vset.pattern.permute.xlu0 0
        %423 = vperm.xlu0 %422, %v393
        %v424 = vpop.permute.xlu0 %423
        %v426 = vadd.f32 %v330, %v396
        %v427 = vadd.f32 %v331, %v396
        %v428 = vadd.f32 %v332, %v400
        %v429 = vadd.f32 %v333, %v400
        %v430 = vadd.f32 %v334, %v404
        %v431 = vadd.f32 %v335, %v404
        %v432 = vadd.f32 %v336, %v408
        %v433 = vadd.f32 %v337, %v408
        %v434 = vadd.f32 %v338, %v412
        %v435 = vadd.f32 %v339, %v412
        %v436 = vadd.f32 %v340, %v416
        %v437 = vadd.f32 %v341, %v416
        %v438 = vadd.f32 %v342, %v420
        %v439 = vadd.f32 %v343, %v420
        %v440 = vadd.f32 %v344, %v424
        %v441 = vadd.f32 %v345, %v424
        %v442 = vmax.f32 %v426, 0.0
        %v443 = vmax.f32 %v427, 0.0
        %v444 = vmax.f32 %v428, 0.0
        %v445 = vmax.f32 %v429, 0.0
        %v446 = vmax.f32 %v430, 0.0
        %v447 = vmax.f32 %v431, 0.0
        %v448 = vmax.f32 %v432, 0.0
        %v449 = vmax.f32 %v433, 0.0
        %v450 = vmax.f32 %v434, 0.0
        %v451 = vmax.f32 %v435, 0.0
        %v452 = vmax.f32 %v436, 0.0
        %v453 = vmax.f32 %v437, 0.0
        %v454 = vmax.f32 %v438, 0.0
        %v455 = vmax.f32 %v439, 0.0
        %v456 = vmax.f32 %v440, 0.0
        %v457 = vmax.f32 %v441, 0.0
        %vm458 = vcmask 130048
        %459 = vst.msk [vmem:[%s217] sm:$0xff] %vm458, %v442
        %460 = vst.msk [vmem:[%s217 + $0x8] sm:$0xff] %vm458, %v443
        %461 = vst.msk [vmem:[%s217 + $0x10] sm:$0xff] %vm458, %v444
        %462 = vst.msk [vmem:[%s217 + $0x18] sm:$0xff] %vm458, %v445
        %463 = vst.msk [vmem:[%s217 + $0x20] sm:$0xff] %vm458, %v446
        %464 = vst.msk [vmem:[%s217 + $0x28] sm:$0xff] %vm458, %v447
        %465 = vst.msk [vmem:[%s217 + $0x30] sm:$0xff] %vm458, %v448
        %466 = vst.msk [vmem:[%s217 + $0x38] sm:$0xff] %vm458, %v449
        %467 = vst.msk [vmem:[%s217 + $0x40] sm:$0xff] %vm458, %v450
        %468 = vst.msk [vmem:[%s217 + $0x48] sm:$0xff] %vm458, %v451
        %469 = vst.msk [vmem:[%s217 + $0x50] sm:$0xff] %vm458, %v452
        %470 = vst.msk [vmem:[%s217 + $0x58] sm:$0xff] %vm458, %v453
        %471 = vst.msk [vmem:[%s217 + $0x60] sm:$0xff] %vm458, %v454
        %472 = vst.msk [vmem:[%s217 + $0x68] sm:$0xff] %vm458, %v455
        %473 = vst.msk [vmem:[%s217 + $0x70] sm:$0xff] %vm458, %v456
        %474 = vst.msk [vmem:[%s217 + $0x78] sm:$0xff] %vm458, %v457
        %s475 = sand.u32 %s97, 1
        %s476 = scalar_lea.sflag [#allocation4], %s475
        %s477 = sand.u32 %s97, 1
        %s478 = smul.addr %s477, 128
        %s479 = scalar_lea.vmem [#allocation8], %s478
        // Predicated region
        $region45: #{conv_block_forward.3} parent=31 // pred_check
          %p480 = pneg %p107
        $region46: #{conv_block_forward.3} parent=31 // pred_check_branch
          %482 = sbr.rel (%p480) target = $region48
        $region47: #{conv_block_forward.3} parent=31 // pred_region
          %s484 = ssub.s32 2048, 2048
          %485 = vsyncadd %s476, %s484
          %s486 = smul.addr %s21, 16
          %s487 = smul.addr %s486, 128
          %s488 = scalar_lea.hbm %s3, %s487
          %s489 = sshll.u32 %s479, 4
          %s490 = int_to_ptr.vmem [resolvable:$true] %s489
          %495 = dma.vmem_to_hbm [thread:$0]  %s490, 2048, %s488, %s476, 128, 128, 8
        $region48: #{conv_block_forward.3} parent=31 // pred_fallthru
          _
      $region32: #{conv_block_forward.3} parent=5 // pred_fallthru
        _
      %p496 = scmp.le.s32.totalorder 2, %s16
      // Predicated region
      $region49: #{conv_block_forward.3} parent=5 // pred_check
        %p497 = pneg %p496
      $region50: #{conv_block_forward.3} parent=5 // pred_check_branch
        %499 = sbr.rel (%p497) target = $region52
      $region51: #{conv_block_forward.3} parent=5 // pred_region
        %s500 = ssub.s32 %s16, 2
        // Predicated region
        $region53: #{conv_block_forward.3} parent=51 // pred_check
          %p501 = pneg %p113
        $region54: #{conv_block_forward.3} parent=51 // pred_check_branch
          %503 = sbr.rel (%p501) target = $region56
        $region55: #{conv_block_forward.3} parent=51 // pred_region
          %s504 = sand.u32 %s98, 1
          %s505 = scalar_lea.sflag [#allocation4], %s504
          %s506 = sand.u32 %s98, 1
          %s507 = smul.addr %s506, 128
          %s508 = scalar_lea.vmem [#allocation8], %s507
          %509 = dma.done %s505, 2048
        $region56: #{conv_block_forward.3} parent=51 // pred_fallthru
          _
      $region52: #{conv_block_forward.3} parent=5 // pred_fallthru
        _
    $region6: #{conv_block_forward.3} parent=1 // loop_footer
      %s20 = sadd.s32 1, %s16
    $region7: #{conv_block_forward.3} parent=1 // loop_footer_branch
      %15 = sbr.rel target = $region3
    $region8: #{conv_block_forward.3} parent=1 // loop_exit
      _
    %510 = vsyncpa [#allocation3], 1
    %s511 = scalar_lea.sflag [#allocation3], 1
    %512 = vsyncpa %s511, 1
    %513 = vsyncpa [#allocation6], 1
    %514 = vsyncpa [#allocation4], 1
    %s515 = scalar_lea.sflag [#allocation4], 1
    %516 = vsyncpa %s515, 1

// kernel: conv_block_forward.2
$region0: #{conv_block_forward.2}
  #allocation0 [shape = 'u32[]', space=smem, size = 0x4, offset = 0x4, fixed_abs, tag = 'smem constant byte address 0x4 - core index']
  #allocation1 [shape = 'u32[144,128]{1,0:T(1,128)}', space=vmem, size = 0x12000, scoped, tag = 'internal scratch']
  #allocation2 [shape = 'f32[8,288]{1,0:T(8,128)}', space=vmem, size = 0x3000, scoped, tag = 'scratch operand']
  %s0 = inlined_call_operand.hbm [shape: f32[1,288], index: 0, kind: input, shape index: {}]
  %s1 = inlined_call_operand.hbm [shape: bf16[8,36], index: 1, kind: input, shape index: {}]
  %s2 = inlined_call_operand.hbm [shape: bf16[2,4,342], index: 2, kind: input, shape index: {}]
  %s3 = inlined_call_operand.hbm [shape: bf16[2,8,288], index: 3, kind: output, shape index: {0}]
  %s4 = inlined_call_operand.hbm [shape: f32[8,1], index: 4, kind: output, shape index: {1}]
  %s5 = inlined_call_operand.hbm [shape: f32[8,1], index: 5, kind: output, shape index: {2}]
  %6 = xla_tuple %s3, %s4, %s5
  %s7 = sld [smem:[#allocation0]]
  $region77: #{conv_block_forward.2} parent=0
    _
  %s9 = ssub.s32 1, %s7
  %s10 = scalar_select 0, %s9, %s7
  $region1: #{conv_block_forward.2} parent=0
    #allocation3 [shape = 'u8[1536]{0}', space=vmem, size = 0x800, scoped, tag = 'input window, operand 0, single buffered']
    #allocation4 [shape = 's32[2]{0}', space=sflag, size = 0x8, scoped, tag = 'scoped memory for conv_block_forward.2']
    #allocation5 [shape = 's32[2]{0}', space=sflag, size = 0x8, scoped, tag = 'scoped memory for conv_block_forward.2']
    #allocation6 [shape = 'u8[2048]{0}', space=vmem, size = 0x800, scoped, tag = 'input window, operand 1, single buffered']
    #allocation7 [shape = 's32[1]{0}', space=sflag, size = 0x4, scoped, tag = 'scoped memory for conv_block_forward.2']
    #allocation8 [shape = 'u8[6144]{0}', space=vmem, size = 0x1800, scoped, tag = 'input window, operand 2']
    #allocation9 [shape = 'u8[12288]{0}', space=vmem, size = 0x3000, scoped, tag = 'output window, operand 0']
    #allocation10 [shape = 'u8[4096]{0}', space=vmem, size = 0x1000, scoped, tag = 'output window, operand 1, single buffered']
    #allocation11 [shape = 's32[1]{0}', space=sflag, size = 0x4, scoped, tag = 'scoped memory for conv_block_forward.2']
    #allocation12 [shape = 'u8[4096]{0}', space=vmem, size = 0x1000, scoped, tag = 'output window, operand 2, single buffered']
    %11 = vsyncpa [#allocation4], 0
    %12 = vsyncpa [#allocation7], 0
    %13 = vsyncpa [#allocation5], 0
    %s14 = scalar_lea.sflag [#allocation5], 1
    %15 = vsyncpa %s14, 0
    %16 = vsyncpa [#allocation11], 0
    loop: start=0, step=1, limit=4
    $region2: #{conv_block_forward.2} parent=1 // loop_pre_header
      _
    $region3: #{conv_block_forward.2} parent=1 // loop_header
      %s18 = sphi 0, %s22
      %p19 = scmp.ge.s32.totalorder %s18, 4
      %s26 = sphi 0, %s26
      %s28 = sphi 0, %s26
      %s29 = sphi 0, %s28
      %s43 = sphi 0, %s29
      %s47 = sphi 0, %s47
      %s49 = sphi 0, %s47
      %s50 = sphi 0, %s49
      %s64 = sphi 0, %s50
      %s70 = sphi 0, %s72
      %s73 = sphi 0, %s70
      %s74 = sphi 0, %s73
      %s90 = sphi 0, %s74
      %s96 = sphi 0, %s98
      %s99 = sphi 0, %s96
      %s100 = sphi 0, %s99
      %s116 = sphi 0, %s100
      %s120 = sphi 0, %s120
      %s122 = sphi 0, %s120
      %s123 = sphi 0, %s122
      %s137 = sphi 0, %s123
      %s141 = sphi 0, %s141
      %s143 = sphi 0, %s141
      %s144 = sphi 0, %s143
      %s158 = sphi 0, %s144
    $region4: #{conv_block_forward.2} parent=1 // loop_header_branch
      %21 = sbr.rel (%p19) target = $region8
    $region5: #{conv_block_forward.2} parent=1 // loop_body
      %s23 = ssub.s32 %s18, 1
      %s24 = ssub.s32 %s18, 2
      %s25 = sadd.s32 %s18, 1
      %s27 = sadd.s32 %s26, 1
      %p30 = scmp.eq.s32.totalorder %s18, 1
      %p31 = scmp.ne.s32.totalorder %s26, %s28
      %p32 = scmp.eq.s32.totalorder %s18, 0
      %p33 = por %p31, %p32
      %p34 = scmp.ne.s32.totalorder %s26, %s28
      %p35 = scmp.eq.s32.totalorder %s23, 1
      %p36 = por %p34, %p35
      %p37 = scmp.ne.s32.totalorder %s28, %s29
      %p38 = scmp.eq.s32.totalorder %s23, 0
      %p39 = por %p37, %p38
      %p40 = scmp.ne.s32.totalorder %s28, %s29
      %p41 = scmp.eq.s32.totalorder %s24, 1
      %p42 = por %p40, %p41
      %p44 = scmp.ne.s32.totalorder %s29, %s43
      %p45 = scmp.eq.s32.totalorder %s24, 0
      %p46 = por %p44, %p45
      %s48 = sadd.s32 %s47, 1
      %p51 = scmp.eq.s32.totalorder %s18, 1
      %p52 = scmp.ne.s32.totalorder %s47, %s49
      %p53 = scmp.eq.s32.totalorder %s18, 0
      %p54 = por %p52, %p53
      %p55 = scmp.ne.s32.totalorder %s47, %s49
      %p56 = scmp.eq.s32.totalorder %s23, 1
      %p57 = por %p55, %p56
      %p58 = scmp.ne.s32.totalorder %s49, %s50
      %p59 = scmp.eq.s32.totalorder %s23, 0
      %p60 = por %p58, %p59
      %p61 = scmp.ne.s32.totalorder %s49, %s50
      %p62 = scmp.eq.s32.totalorder %s24, 1
      %p63 = por %p61, %p62
      %p65 = scmp.ne.s32.totalorder %s50, %s64
      %p66 = scmp.eq.s32.totalorder %s24, 0
      %p67 = por %p65, %p66
      %s68 = ssub.s32 %s18, %s25
      %p69 = scmp.eq.s32.totalorder %s68, 0
      %s71 = sadd.s32 %s70, 1
      %s72 = scalar_select %p69, %s70, %s71
      %p75 = pneg %p69
      %p76 = scmp.eq.s32.totalorder %s18, 1
      %p77 = por %p75, %p76
      %p78 = scmp.ne.s32.totalorder %s70, %s73
      %p79 = scmp.eq.s32.totalorder %s18, 0
      %p80 = por %p78, %p79
      %p81 = scmp.ne.s32.totalorder %s70, %s73
      %p82 = scmp.eq.s32.totalorder %s23, 1
      %p83 = por %p81, %p82
      %p84 = scmp.ne.s32.totalorder %s73, %s74
      %p85 = scmp.eq.s32.totalorder %s23, 0
      %p86 = por %p84, %p85
      %p87 = scmp.ne.s32.totalorder %s73, %s74
      %p88 = scmp.eq.s32.totalorder %s24, 1
      %p89 = por %p87, %p88
      %p91 = scmp.ne.s32.totalorder %s74, %s90
      %p92 = scmp.eq.s32.totalorder %s24, 0
      %p93 = por %p91, %p92
      %s94 = ssub.s32 %s18, %s25
      %p95 = scmp.eq.s32.totalorder %s94, 0
      %s97 = sadd.s32 %s96, 1
      %s98 = scalar_select %p95, %s96, %s97
      %p101 = pneg %p95
      %p102 = scmp.eq.s32.totalorder %s18, 1
      %p103 = por %p101, %p102
      %p104 = scmp.ne.s32.totalorder %s96, %s99
      %p105 = scmp.eq.s32.totalorder %s18, 0
      %p106 = por %p104, %p105
      %p107 = scmp.ne.s32.totalorder %s96, %s99
      %p108 = scmp.eq.s32.totalorder %s23, 1
      %p109 = por %p107, %p108
      %p110 = scmp.ne.s32.totalorder %s99, %s100
      %p111 = scmp.eq.s32.totalorder %s23, 0
      %p112 = por %p110, %p111
      %p113 = scmp.ne.s32.totalorder %s99, %s100
      %p114 = scmp.eq.s32.totalorder %s24, 1
      %p115 = por %p113, %p114
      %p117 = scmp.ne.s32.totalorder %s100, %s116
      %p118 = scmp.eq.s32.totalorder %s24, 0
      %p119 = por %p117, %p118
      %s121 = sadd.s32 %s120, 1
      %p124 = scmp.eq.s32.totalorder %s18, 1
      %p125 = scmp.ne.s32.totalorder %s120, %s122
      %p126 = scmp.eq.s32.totalorder %s18, 0
      %p127 = por %p125, %p126
      %p128 = scmp.ne.s32.totalorder %s120, %s122
      %p129 = scmp.eq.s32.totalorder %s23, 1
      %p130 = por %p128, %p129
      %p131 = scmp.ne.s32.totalorder %s122, %s123
      %p132 = scmp.eq.s32.totalorder %s23, 0
      %p133 = por %p131, %p132
      %p134 = scmp.ne.s32.totalorder %s122, %s123
      %p135 = scmp.eq.s32.totalorder %s24, 1
      %p136 = por %p134, %p135
      %p138 = scmp.ne.s32.totalorder %s123, %s137
      %p139 = scmp.eq.s32.totalorder %s24, 0
      %p140 = por %p138, %p139
      %s142 = sadd.s32 %s141, 1
      %p145 = scmp.eq.s32.totalorder %s18, 1
      %p146 = scmp.ne.s32.totalorder %s141, %s143
      %p147 = scmp.eq.s32.totalorder %s18, 0
      %p148 = por %p146, %p147
      %p149 = scmp.ne.s32.totalorder %s141, %s143
      %p150 = scmp.eq.s32.totalorder %s23, 1
      %p151 = por %p149, %p150
      %p152 = scmp.ne.s32.totalorder %s143, %s144
      %p153 = scmp.eq.s32.totalorder %s23, 0
      %p154 = por %p152, %p153
      %p155 = scmp.ne.s32.totalorder %s143, %s144
      %p156 = scmp.eq.s32.totalorder %s24, 1
      %p157 = por %p155, %p156
      %p159 = scmp.ne.s32.totalorder %s144, %s158
      %p160 = scmp.eq.s32.totalorder %s24, 0
      %p161 = por %p159, %p160
      %p162 = scmp.le.s32.totalorder 1, %s18
      %p163 = scmp.lt.s32.totalorder %s18, 3
      %p164 = pnand %p162, %p163
      %p165 = pneg %p164
      // Predicated region
      $region9: #{conv_block_forward.2} parent=5 // pred_check
        _
      $region10: #{conv_block_forward.2} parent=5 // pred_check_branch
        %167 = sbr.rel (%p164) target = $region12
      $region11: #{conv_block_forward.2} parent=5 // pred_region
        %s168 = ssub.s32 %s18, 1
        // Predicated region
        $region13: #{conv_block_forward.2} parent=11 // pred_check
          %p169 = pneg %p39
        $region14: #{conv_block_forward.2} parent=11 // pred_check_branch
          %171 = sbr.rel (%p169) target = $region16
        $region15: #{conv_block_forward.2} parent=11 // pred_region
          %s173 = ssub.s32 48, 48
          %174 = vsyncadd [#allocation4], %s173
          %s176 = sshll.u32 [#allocation3], 4
          %s177 = int_to_ptr.vmem [resolvable:$true] %s176
          %179 = dma.hbm_to_vmem [thread:$0]  %s0, 48, %s177, [#allocation4]
        $region16: #{conv_block_forward.2} parent=11 // pred_fallthru
          _
        // Predicated region
        $region17: #{conv_block_forward.2} parent=11 // pred_check
          %p180 = pneg %p60
        $region18: #{conv_block_forward.2} parent=11 // pred_check_branch
          %182 = sbr.rel (%p180) target = $region20
        $region19: #{conv_block_forward.2} parent=11 // pred_region
          %s184 = ssub.s32 64, 64
          %185 = vsyncadd [#allocation7], %s184
          %s187 = sshll.u32 [#allocation6], 4
          %s188 = int_to_ptr.vmem [resolvable:$true] %s187
          %190 = dma.hbm_to_vmem [thread:$0]  %s1, 64, %s188, [#allocation7]
        $region20: #{conv_block_forward.2} parent=11 // pred_fallthru
          _
      $region12: #{conv_block_forward.2} parent=5 // pred_fallthru
        _
      %p191 = scmp.lt.s32.totalorder %s18, 2
      // Predicated region
      $region21: #{conv_block_forward.2} parent=5 // pred_check
        %p192 = pneg %p191
      $region22: #{conv_block_forward.2} parent=5 // pred_check_branch
        %194 = sbr.rel (%p192) target = $region24
      $region23: #{conv_block_forward.2} parent=5 // pred_region
        // Predicated region
        $region25: #{conv_block_forward.2} parent=23 // pred_check
          %p195 = pneg %p80
        $region26: #{conv_block_forward.2} parent=23 // pred_check_branch
          %197 = sbr.rel (%p195) target = $region28
        $region27: #{conv_block_forward.2} parent=23 // pred_region
          %s198 = sand.u32 %s18, 1
          %s199 = scalar_lea.sflag [#allocation4], %s198
          %s200 = sand.u32 %s70, 1
          %s201 = smul.addr %s200, 6
          %s202 = scalar_lea.vmem [#allocation8], %s201
          %s204 = ssub.s32 96, 96
          %205 = vsyncadd %s199, %s204
          %s206 = smul.addr %s18, 3
          %s207 = smul.addr %s206, 32
          %s208 = scalar_lea.hbm %s2, %s207
          %s210 = sshll.u32 %s202, 4
          %s211 = int_to_ptr.vmem [resolvable:$true] %s210
          %213 = dma.hbm_to_vmem [thread:$0]  %s208, 96, %s211, %s199
        $region28: #{conv_block_forward.2} parent=23 // pred_fallthru
          _
      $region24: #{conv_block_forward.2} parent=5 // pred_fallthru
        _
      %p214 = scmp.le.s32.totalorder 1, %s18
      %p215 = scmp.lt.s32.totalorder %s18, 3
      %p216 = pnand %p214, %p215
      %p217 = pneg %p216
      // Predicated region
      $region29: #{conv_block_forward.2} parent=5 // pred_check
        _
      $region30: #{conv_block_forward.2} parent=5 // pred_check_branch
        %219 = sbr.rel (%p216) target = $region32
      $region31: #{conv_block_forward.2} parent=5 // pred_region
        %s220 = ssub.s32 %s18, 1
        // Predicated region
        $region33: #{conv_block_forward.2} parent=31 // pred_check
          %p221 = pneg %p39
        $region34: #{conv_block_forward.2} parent=31 // pred_check_branch
          %223 = sbr.rel (%p221) target = $region36
        $region35: #{conv_block_forward.2} parent=31 // pred_region
          %224 = dma.done [#allocation4], 48
        $region36: #{conv_block_forward.2} parent=31 // pred_fallthru
          _
        // Predicated region
        $region37: #{conv_block_forward.2} parent=31 // pred_check
          %p225 = pneg %p60
        $region38: #{conv_block_forward.2} parent=31 // pred_check_branch
          %227 = sbr.rel (%p225) target = $region40
        $region39: #{conv_block_forward.2} parent=31 // pred_region
          %228 = dma.done [#allocation7], 64
        $region40: #{conv_block_forward.2} parent=31 // pred_fallthru
          _
        %s229 = sand.u32 %s23, 1
        %s230 = scalar_lea.sflag [#allocation4], %s229
        %s231 = sand.u32 %s73, 1
        %s232 = smul.addr %s231, 6
        %s233 = scalar_lea.vmem [#allocation8], %s232
        // Predicated region
        $region41: #{conv_block_forward.2} parent=31 // pred_check
          %p234 = pneg %p86
        $region42: #{conv_block_forward.2} parent=31 // pred_check_branch
          %236 = sbr.rel (%p234) target = $region44
        $region43: #{conv_block_forward.2} parent=31 // pred_region
          %237 = dma.done %s230, 96
        $region44: #{conv_block_forward.2} parent=31 // pred_fallthru
          _
        %p238 = pneg %p39
        %p239 = pneg %p36
        %p240 = pneg %p60
        %p241 = pneg %p57
        %s242 = sand.u32 %s23, 1
        %s243 = scalar_lea.sflag [#allocation4], %s242
        %s244 = sand.u32 %s73, 1
        %s245 = smul.addr %s244, 6
        %s246 = scalar_lea.vmem [#allocation8], %s245
        %p247 = pneg %p86
        %p248 = pneg %p83
        %p249 = pneg %p112
        %p250 = pneg %p109
        %s251 = sand.u32 %s99, 1
        %s252 = scalar_lea.sflag [#allocation5], %s251
        %s253 = sand.u32 %s99, 1
        %s254 = smul.addr %s253, 12
        %s255 = scalar_lea.vmem [#allocation9], %s254
        %p256 = pneg %p133
        %p257 = pneg %p130
        %p258 = pneg %p154
        %p259 = pneg %p151
        %p261 = scmp.eq.s32.totalorder %s23, 0
        // Predicated region
        $region45: #{conv_block_forward.2} parent=31 // pred_check
          %p262 = pneg %p261
        $region46: #{conv_block_forward.2} parent=31 // pred_check_branch
          %264 = sbr.rel (%p262) target = $region48
        $region47: #{conv_block_forward.2} parent=31 // pred_region
          %vm265 = vcmask 7168
          %266 = vst.msk [vmem:[#allocation10] sm:$0xff] %vm265, 0.0
          %267 = vst.msk [vmem:[#allocation12] sm:$0xff] %vm265, 0.0
        $region48: #{conv_block_forward.2} parent=31 // pred_fallthru
          _
        %268 = vst [vmem:[#allocation2] sm:$0xff] 0.0
        %269 = vst [vmem:[#allocation2 + $0x8] sm:$0xff] 0.0
        %vm270 = vcmask 261120
        %271 = vst.msk [vmem:[#allocation2 + $0x10] sm:$0xff] %vm270, 0.0
        %v272 = vld [vmem:[%s233] sm:$0x3f]
        %v273 = vld [vmem:[#allocation6] sm:$0xf]
        %v274 = vld [vmem:[#allocation2] sm:$0xff]
        %v275 = vld [vmem:[#allocation2 + $0x8] sm:$0xff]
        %v276 = vld [vmem:[#allocation2 + $0x10] sm:$0xff]
        %v278 = vcombine.high %v272, %v272
        %v280 = vunpack.c.l.s4 1983009808
        %v281 = vunpack.c.0.s8 %v280
        %v282 = vlaneseq
        %v283 = vshrl.u32 %v282, 7
        %v284 = vsub.s32 %v281, %v283
        %v285 = vrot.slane %v272, %v284
        %v287 = vunpack.c.l.s4 1983009808
        %v288 = vunpack.c.0.s8 %v287
        %v289 = vlaneseq
        %v290 = vshrl.u32 %v289, 7
        %v291 = vsub.s32 %v288, %v290
        %v292 = vrot.slane %v278, %v291
        %v293 = vcombine.high %v285, %v285
        %vm294 = vcmask 31744
        %v296 = vsel %vm294, %v273, 0
        %vm298 = vcmask 1041408
        %v300 = vsel %vm298, %v285, 0
        %v303 = vsel %vm298, %v293, 0
        %v306 = vsel %vm298, %v292, 0
        %308 = vmatprep.subr.bf16.mxu0 %v303
        %309 = vmatpush1.bf16.msra.mxu0 %v300
        %310 = vmatprep.subr.bf16.mxu0 0
        %311 = vmatpush1.bf16.msra.mxu0 0
        %312 = vmatprep.subr.bf16.mxu0 0
        %313 = vmatpush1.bf16.msra.mxu0 0
        %314 = vmatprep.subr.bf16.mxu0 0
        %315 = vmatpush1.bf16.msra.mxu0 0
        %316 = vmatprep.subr.bf16.mxu0 0
        %317 = vmatpush1.bf16.msra.mxu0 0
        %318 = vmatprep.subr.bf16.mxu0 0
        %319 = vmatpush1.bf16.msra.mxu0 0
        %320 = vmatprep.subr.bf16.mxu0 0
        %321 = vmatpush1.bf16.msra.mxu0 0
        %322 = vmatprep.subr.bf16.mxu0 0
        %323 = vmatpush1.bf16.msra.mxu0 0
        %324 = vmatprep.subr.bf16.mxu0 0
        %325 = vmatpush1.bf16.msra.mxu0 0
        %326 = vmatprep.subr.bf16.mxu0 0
        %327 = vmatpush1.bf16.msra.mxu0 0
        %328 = vmatprep.subr.bf16.mxu0 0
        %329 = vmatpush1.bf16.msra.mxu0 0
        %330 = vmatprep.subr.bf16.mxu0 0
        %331 = vmatpush1.bf16.msra.mxu0 0
        %332 = vmatprep.subr.bf16.mxu0 0
        %333 = vmatpush1.bf16.msra.mxu0 0
        %334 = vmatprep.subr.bf16.mxu0 0
        %335 = vmatpush1.bf16.msra.mxu0 0
        %336 = vmatprep.subr.bf16.mxu0 0
        %337 = vmatpush1.bf16.msra.mxu0 0
        %338 = vmatprep.subr.bf16.mxu0 0
        %339 = vmatpush1.bf16.msra.mxu0 0
        %340 = vmatprep.mubr.bf16.mxu0 0
        %341 = vmatmul.mubr.bf16.gmra.mrb[0].mxu0 %v296
        %v342 = vpop.f32.mrb[0].mxu0
        %v343 = vadd.f32 0.0, %v342
        %v344 = vpop.f32.mrb[0].mxu0
        %v345 = vadd.f32 0.0, %v344
        %v346 = vpop.f32.mrb[0].mxu0
        %v347 = vpop.f32.mrb[0].mxu0
        %348 = vdwg.mxu0
        %349 = vmatprep.subr.bf16.mxu0 0
        %350 = vmatpush1.bf16.msra.mxu0 %v306
        %351 = vmatprep.subr.bf16.mxu0 0
        %352 = vmatpush1.bf16.msra.mxu0 0
        %353 = vmatprep.subr.bf16.mxu0 0
        %354 = vmatpush1.bf16.msra.mxu0 0
        %355 = vmatprep.subr.bf16.mxu0 0
        %356 = vmatpush1.bf16.msra.mxu0 0
        %357 = vmatprep.subr.bf16.mxu0 0
        %358 = vmatpush1.bf16.msra.mxu0 0
        %359 = vmatprep.subr.bf16.mxu0 0
        %360 = vmatpush1.bf16.msra.mxu0 0
        %361 = vmatprep.subr.bf16.mxu0 0
        %362 = vmatpush1.bf16.msra.mxu0 0
        %363 = vmatprep.subr.bf16.mxu0 0
        %364 = vmatpush1.bf16.msra.mxu0 0
        %365 = vmatprep.subr.bf16.mxu0 0
        %366 = vmatpush1.bf16.msra.mxu0 0
        %367 = vmatprep.subr.bf16.mxu0 0
        %368 = vmatpush1.bf16.msra.mxu0 0
        %369 = vmatprep.subr.bf16.mxu0 0
        %370 = vmatpush1.bf16.msra.mxu0 0
        %371 = vmatprep.subr.bf16.mxu0 0
        %372 = vmatpush1.bf16.msra.mxu0 0
        %373 = vmatprep.subr.bf16.mxu0 0
        %374 = vmatpush1.bf16.msra.mxu0 0
        %375 = vmatprep.subr.bf16.mxu0 0
        %376 = vmatpush1.bf16.msra.mxu0 0
        %377 = vmatprep.subr.bf16.mxu0 0
        %378 = vmatpush1.bf16.msra.mxu0 0
        %379 = vmatprep.subr.bf16.mxu0 0
        %380 = vmatpush1.bf16.msra.mxu0 0
        %381 = vmatprep.mubr.bf16.mxu0 0
        %382 = vmatmul.mubr.bf16.gmra.mrb[0].mxu0 %v296
        %v383 = vpop.f32.mrb[0].mxu0
        %v384 = vadd.f32 0.0, %v383
        %v385 = vpop.f32.mrb[0].mxu0
        %v386 = vpop.f32.mrb[0].mxu0
        %v387 = vpop.f32.mrb[0].mxu0
        %388 = vdwg.mxu0
        %v389 = vadd.f32 %v274, %v343
        %v390 = vadd.f32 %v275, %v345
        %v391 = vadd.f32 %v276, %v384
        %392 = vst [vmem:[#allocation2] sm:$0xff] %v389
        %393 = vst [vmem:[#allocation2 + $0x8] sm:$0xff] %v390
        %394 = vst.msk [vmem:[#allocation2 + $0x10] sm:$0xff] %vm270, %v391
        %v395 = vld [vmem:[%s233] sm:$0x3f]
        %v396 = vld [vmem:[#allocation6] sm:$0xf]
        %v397 = vld [vmem:[#allocation2] sm:$0xff]
        %v398 = vld [vmem:[#allocation2 + $0x8] sm:$0xff]
        %v399 = vld [vmem:[#allocation2 + $0x10] sm:$0xff]
        %v401 = vunpack.c.l.b16 %v396
        %v402 = vpack.c.b16 %v401, %v401
        %403 = vrot.lane.b32.xlu0 %v402, 124
        %v404 = vpop.permute.xlu0 %403
        %v406 = vcombine.high %v395, %v395
        %v408 = vunpack.c.l.s4 1983009808
        %v409 = vunpack.c.0.s8 %v408
        %v410 = vlaneseq
        %v411 = vshrl.u32 %v410, 7
        %v412 = vsub.s32 %v409, %v411
        %v413 = vrot.slane %v395, %v412
        %v415 = vunpack.c.l.s4 1983009808
        %v416 = vunpack.c.0.s8 %v415
        %v417 = vlaneseq
        %v418 = vshrl.u32 %v417, 7
        %v419 = vsub.s32 %v416, %v418
        %v420 = vrot.slane %v406, %v419
        %v421 = vcombine.high %v413, %v413
        %422 = vrot.lane.b32.xlu0 %v413, 127
        %v423 = vpop.permute.xlu0 %422
        %424 = vrot.lane.b32.xlu0 %v421, 127
        %v425 = vpop.permute.xlu0 %424
        %426 = vrot.lane.b32.xlu0 %v420, 127
        %v427 = vpop.permute.xlu0 %426
        %vm428 = vcmask 1039360
        %v429 = vsel %vm428, %v423, %v425
        %v430 = vsel %vm428, %v425, %v427
        %v432 = vsel %vm294, %v404, 0
        %v435 = vsel %vm298, %v429, 0
        %v438 = vsel %vm298, %v430, 0
        %v441 = vsel %vm298, %v427, 0
        %443 = vmatprep.subr.bf16.mxu0 %v438
        %444 = vmatpush1.bf16.msra.mxu0 %v435
        %445 = vmatprep.subr.bf16.mxu0 0
        %446 = vmatpush1.bf16.msra.mxu0 0
        %447 = vmatprep.subr.bf16.mxu0 0
        %448 = vmatpush1.bf16.msra.mxu0 0
        %449 = vmatprep.subr.bf16.mxu0 0
        %450 = vmatpush1.bf16.msra.mxu0 0
        %451 = vmatprep.subr.bf16.mxu0 0
        %452 = vmatpush1.bf16.msra.mxu0 0
        %453 = vmatprep.subr.bf16.mxu0 0
        %454 = vmatpush1.bf16.msra.mxu0 0
        %455 = vmatprep.subr.bf16.mxu0 0
        %456 = vmatpush1.bf16.msra.mxu0 0
        %457 = vmatprep.subr.bf16.mxu0 0
        %458 = vmatpush1.bf16.msra.mxu0 0
        %459 = vmatprep.subr.bf16.mxu0 0
        %460 = vmatpush1.bf16.msra.mxu0 0
        %461 = vmatprep.subr.bf16.mxu0 0
        %462 = vmatpush1.bf16.msra.mxu0 0
        %463 = vmatprep.subr.bf16.mxu0 0
        %464 = vmatpush1.bf16.msra.mxu0 0
        %465 = vmatprep.subr.bf16.mxu0 0
        %466 = vmatpush1.bf16.msra.mxu0 0
        %467 = vmatprep.subr.bf16.mxu0 0
        %468 = vmatpush1.bf16.msra.mxu0 0
        %469 = vmatprep.subr.bf16.mxu0 0
        %470 = vmatpush1.bf16.msra.mxu0 0
        %471 = vmatprep.subr.bf16.mxu0 0
        %472 = vmatpush1.bf16.msra.mxu0 0
        %473 = vmatprep.subr.bf16.mxu0 0
        %474 = vmatpush1.bf16.msra.mxu0 0
        %475 = vmatprep.mubr.bf16.mxu0 0
        %476 = vmatmul.mubr.bf16.gmra.mrb[0].mxu0 %v432
        %v477 = vpop.f32.mrb[0].mxu0
        %v478 = vadd.f32 0.0, %v477
        %v479 = vpop.f32.mrb[0].mxu0
        %v480 = vadd.f32 0.0, %v479
        %v481 = vpop.f32.mrb[0].mxu0
        %v482 = vpop.f32.mrb[0].mxu0
        %483 = vdwg.mxu0
        %484 = vmatprep.subr.bf16.mxu0 0
        %485 = vmatpush1.bf16.msra.mxu0 %v441
        %486 = vmatprep.subr.bf16.mxu0 0
        %487 = vmatpush1.bf16.msra.mxu0 0
        %488 = vmatprep.subr.bf16.mxu0 0
        %489 = vmatpush1.bf16.msra.mxu0 0
        %490 = vmatprep.subr.bf16.mxu0 0
        %491 = vmatpush1.bf16.msra.mxu0 0
        %492 = vmatprep.subr.bf16.mxu0 0
        %493 = vmatpush1.bf16.msra.mxu0 0
        %494 = vmatprep.subr.bf16.mxu0 0
        %495 = vmatpush1.bf16.msra.mxu0 0
        %496 = vmatprep.subr.bf16.mxu0 0
        %497 = vmatpush1.bf16.msra.mxu0 0
        %498 = vmatprep.subr.bf16.mxu0 0
        %499 = vmatpush1.bf16.msra.mxu0 0
        %500 = vmatprep.subr.bf16.mxu0 0
        %501 = vmatpush1.bf16.msra.mxu0 0
        %502 = vmatprep.subr.bf16.mxu0 0
        %503 = vmatpush1.bf16.msra.mxu0 0
        %504 = vmatprep.subr.bf16.mxu0 0
        %505 = vmatpush1.bf16.msra.mxu0 0
        %506 = vmatprep.subr.bf16.mxu0 0
        %507 = vmatpush1.bf16.msra.mxu0 0
        %508 = vmatprep.subr.bf16.mxu0 0
        %509 = vmatpush1.bf16.msra.mxu0 0
        %510 = vmatprep.subr.bf16.mxu0 0
        %511 = vmatpush1.bf16.msra.mxu0 0
        %512 = vmatprep.subr.bf16.mxu0 0
        %513 = vmatpush1.bf16.msra.mxu0 0
        %514 = vmatprep.subr.bf16.mxu0 0
        %515 = vmatpush1.bf16.msra.mxu0 0
        %516 = vmatprep.mubr.bf16.mxu0 0
        %517 = vmatmul.mubr.bf16.gmra.mrb[0].mxu0 %v432
        %v518 = vpop.f32.mrb[0].mxu0
        %v519 = vadd.f32 0.0, %v518
        %v520 = vpop.f32.mrb[0].mxu0
        %v521 = vpop.f32.mrb[0].mxu0
        %v522 = vpop.f32.mrb[0].mxu0
        %523 = vdwg.mxu0
        %v524 = vadd.f32 %v397, %v478
        %v525 = vadd.f32 %v398, %v480
        %v526 = vadd.f32 %v399, %v519
        %527 = vst [vmem:[#allocation2] sm:$0xff] %v524
        %528 = vst [vmem:[#allocation2 + $0x8] sm:$0xff] %v525
        %529 = vst.msk [vmem:[#allocation2 + $0x10] sm:$0xff] %vm270, %v526
        %v530 = vld [vmem:[%s233] sm:$0x3f]
        %v531 = vld [vmem:[#allocation6] sm:$0xf]
        %v532 = vld [vmem:[#allocation2] sm:$0xff]
        %v533 = vld [vmem:[#allocation2 + $0x8] sm:$0xff]
        %v534 = vld [vmem:[#allocation2 + $0x10] sm:$0xff]
        %v536 = vunpack.c.l.b16 %v531
        %v537 = vpack.c.b16 %v536, %v536
        %538 = vrot.lane.b32.xlu0 %v537, 120
        %v539 = vpop.permute.xlu0 %538
        %v541 = vcombine.high %v530, %v530
        %v543 = vunpack.c.l.s4 1983009808
        %v544 = vunpack.c.0.s8 %v543
        %v545 = vlaneseq
        %v546 = vshrl.u32 %v545, 7
        %v547 = vsub.s32 %v544, %v546
        %v548 = vrot.slane %v530, %v547
        %v550 = vunpack.c.l.s4 1983009808
        %v551 = vunpack.c.0.s8 %v550
        %v552 = vlaneseq
        %v553 = vshrl.u32 %v552, 7
        %v554 = vsub.s32 %v551, %v553
        %v555 = vrot.slane %v541, %v554
        %v556 = vcombine.high %v548, %v548
        %557 = vrot.lane.b32.xlu0 %v548, 126
        %v558 = vpop.permute.xlu0 %557
        %559 = vrot.lane.b32.xlu0 %v556, 126
        %v560 = vpop.permute.xlu0 %559
        %561 = vrot.lane.b32.xlu0 %v555, 126
        %v562 = vpop.permute.xlu0 %561
        %vm563 = vcmask 1031168
        %v564 = vsel %vm563, %v558, %v560
        %v565 = vsel %vm563, %v560, %v562
        %v567 = vsel %vm294, %v539, 0
        %v570 = vsel %vm298, %v564, 0
        %v573 = vsel %vm298, %v565, 0
        %v576 = vsel %vm298, %v562, 0
        %578 = vmatprep.subr.bf16.mxu0 %v573
        %579 = vmatpush1.bf16.msra.mxu0 %v570
        %580 = vmatprep.subr.bf16.mxu0 0
        %581 = vmatpush1.bf16.msra.mxu0 0
        %582 = vmatprep.subr.bf16.mxu0 0
        %583 = vmatpush1.bf16.msra.mxu0 0
        %584 = vmatprep.subr.bf16.mxu0 0
        %585 = vmatpush1.bf16.msra.mxu0 0
        %586 = vmatprep.subr.bf16.mxu0 0
        %587 = vmatpush1.bf16.msra.mxu0 0
        %588 = vmatprep.subr.bf16.mxu0 0
        %589 = vmatpush1.bf16.msra.mxu0 0
        %590 = vmatprep.subr.bf16.mxu0 0
        %591 = vmatpush1.bf16.msra.mxu0 0
        %592 = vmatprep.subr.bf16.mxu0 0
        %593 = vmatpush1.bf16.msra.mxu0 0
        %594 = vmatprep.subr.bf16.mxu0 0
        %595 = vmatpush1.bf16.msra.mxu0 0
        %596 = vmatprep.subr.bf16.mxu0 0
        %597 = vmatpush1.bf16.msra.mxu0 0
        %598 = vmatprep.subr.bf16.mxu0 0
        %599 = vmatpush1.bf16.msra.mxu0 0
        %600 = vmatprep.subr.bf16.mxu0 0
        %601 = vmatpush1.bf16.msra.mxu0 0
        %602 = vmatprep.subr.bf16.mxu0 0
        %603 = vmatpush1.bf16.msra.mxu0 0
        %604 = vmatprep.subr.bf16.mxu0 0
        %605 = vmatpush1.bf16.msra.mxu0 0
        %606 = vmatprep.subr.bf16.mxu0 0
        %607 = vmatpush1.bf16.msra.mxu0 0
        %608 = vmatprep.subr.bf16.mxu0 0
        %609 = vmatpush1.bf16.msra.mxu0 0
        %610 = vmatprep.mubr.bf16.mxu0 0
        %611 = vmatmul.mubr.bf16.gmra.mrb[0].mxu0 %v567
        %v612 = vpop.f32.mrb[0].mxu0
        %v613 = vadd.f32 0.0, %v612
        %v614 = vpop.f32.mrb[0].mxu0
        %v615 = vadd.f32 0.0, %v614
        %v616 = vpop.f32.mrb[0].mxu0
        %v617 = vpop.f32.mrb[0].mxu0
        %618 = vdwg.mxu0
        %619 = vmatprep.subr.bf16.mxu0 0
        %620 = vmatpush1.bf16.msra.mxu0 %v576
        %621 = vmatprep.subr.bf16.mxu0 0
        %622 = vmatpush1.bf16.msra.mxu0 0
        %623 = vmatprep.subr.bf16.mxu0 0
        %624 = vmatpush1.bf16.msra.mxu0 0
        %625 = vmatprep.subr.bf16.mxu0 0
        %626 = vmatpush1.bf16.msra.mxu0 0
        %627 = vmatprep.subr.bf16.mxu0 0
        %628 = vmatpush1.bf16.msra.mxu0 0
        %629 = vmatprep.subr.bf16.mxu0 0
        %630 = vmatpush1.bf16.msra.mxu0 0
        %631 = vmatprep.subr.bf16.mxu0 0
        %632 = vmatpush1.bf16.msra.mxu0 0
        %633 = vmatprep.subr.bf16.mxu0 0
        %634 = vmatpush1.bf16.msra.mxu0 0
        %635 = vmatprep.subr.bf16.mxu0 0
        %636 = vmatpush1.bf16.msra.mxu0 0
        %637 = vmatprep.subr.bf16.mxu0 0
        %638 = vmatpush1.bf16.msra.mxu0 0
        %639 = vmatprep.subr.bf16.mxu0 0
        %640 = vmatpush1.bf16.msra.mxu0 0
        %641 = vmatprep.subr.bf16.mxu0 0
        %642 = vmatpush1.bf16.msra.mxu0 0
        %643 = vmatprep.subr.bf16.mxu0 0
        %644 = vmatpush1.bf16.msra.mxu0 0
        %645 = vmatprep.subr.bf16.mxu0 0
        %646 = vmatpush1.bf16.msra.mxu0 0
        %647 = vmatprep.subr.bf16.mxu0 0
        %648 = vmatpush1.bf16.msra.mxu0 0
        %649 = vmatprep.subr.bf16.mxu0 0
        %650 = vmatpush1.bf16.msra.mxu0 0
        %651 = vmatprep.mubr.bf16.mxu0 0
        %652 = vmatmul.mubr.bf16.gmra.mrb[0].mxu0 %v567
        %v653 = vpop.f32.mrb[0].mxu0
        %v654 = vadd.f32 0.0, %v653
        %v655 = vpop.f32.mrb[0].mxu0
        %v656 = vpop.f32.mrb[0].mxu0
        %v657 = vpop.f32.mrb[0].mxu0
        %658 = vdwg.mxu0
        %v659 = vadd.f32 %v532, %v613
        %v660 = vadd.f32 %v533, %v615
        %v661 = vadd.f32 %v534, %v654
        %662 = vst [vmem:[#allocation2] sm:$0xff] %v659
        %663 = vst [vmem:[#allocation2 + $0x8] sm:$0xff] %v660
        %664 = vst.msk [vmem:[#allocation2 + $0x10] sm:$0xff] %vm270, %v661
        %v665 = vld [vmem:[%s233] sm:$0x3f]
        %v666 = vld [vmem:[#allocation6] sm:$0xf]
        %v667 = vld [vmem:[#allocation2] sm:$0xff]
        %v668 = vld [vmem:[#allocation2 + $0x8] sm:$0xff]
        %v669 = vld [vmem:[#allocation2 + $0x10] sm:$0xff]
        %v671 = vunpack.c.l.b16 %v666
        %v672 = vpack.c.b16 %v671, %v671
        %673 = vrot.lane.b32.xlu0 %v672, 116
        %v674 = vpop.permute.xlu0 %673
        %v676 = vcombine.high %v665, %v665
        %v678 = vunpack.c.l.s4 1983009808
        %v679 = vunpack.c.0.s8 %v678
        %v680 = vlaneseq
        %v681 = vshrl.u32 %v680, 7
        %v682 = vsub.s32 %v679, %v681
        %v683 = vrot.slane %v665, %v682
        %v685 = vunpack.c.l.s4 1983009808
        %v686 = vunpack.c.0.s8 %v685
        %v687 = vlaneseq
        %v688 = vshrl.u32 %v687, 7
        %v689 = vsub.s32 %v686, %v688
        %v690 = vrot.slane %v676, %v689
        %v691 = vcombine.high %v683, %v683
        %692 = vrot.lane.b32.xlu0 %v683, 110
        %v693 = vpop.permute.xlu0 %692
        %694 = vrot.lane.b32.xlu0 %v691, 110
        %v695 = vpop.permute.xlu0 %694
        %696 = vrot.lane.b32.xlu0 %v690, 110
        %v697 = vpop.permute.xlu0 %696
        %vm698 = vcmask 900096
        %v699 = vsel %vm698, %v693, %v695
        %v700 = vsel %vm698, %v695, %v697
        %v702 = vsel %vm294, %v674, 0
        %v705 = vsel %vm298, %v699, 0
        %v708 = vsel %vm298, %v700, 0
        %v711 = vsel %vm298, %v697, 0
        %713 = vmatprep.subr.bf16.mxu0 %v708
        %714 = vmatpush1.bf16.msra.mxu0 %v705
        %715 = vmatprep.subr.bf16.mxu0 0
        %716 = vmatpush1.bf16.msra.mxu0 0
        %717 = vmatprep.subr.bf16.mxu0 0
        %718 = vmatpush1.bf16.msra.mxu0 0
        %719 = vmatprep.subr.bf16.mxu0 0
        %720 = vmatpush1.bf16.msra.mxu0 0
        %721 = vmatprep.subr.bf16.mxu0 0
        %722 = vmatpush1.bf16.msra.mxu0 0
        %723 = vmatprep.subr.bf16.mxu0 0
        %724 = vmatpush1.bf16.msra.mxu0 0
        %725 = vmatprep.subr.bf16.mxu0 0
        %726 = vmatpush1.bf16.msra.mxu0 0
        %727 = vmatprep.subr.bf16.mxu0 0
        %728 = vmatpush1.bf16.msra.mxu0 0
        %729 = vmatprep.subr.bf16.mxu0 0
        %730 = vmatpush1.bf16.msra.mxu0 0
        %731 = vmatprep.subr.bf16.mxu0 0
        %732 = vmatpush1.bf16.msra.mxu0 0
        %733 = vmatprep.subr.bf16.mxu0 0
        %734 = vmatpush1.bf16.msra.mxu0 0
        %735 = vmatprep.subr.bf16.mxu0 0
        %736 = vmatpush1.bf16.msra.mxu0 0
        %737 = vmatprep.subr.bf16.mxu0 0
        %738 = vmatpush1.bf16.msra.mxu0 0
        %739 = vmatprep.subr.bf16.mxu0 0
        %740 = vmatpush1.bf16.msra.mxu0 0
        %741 = vmatprep.subr.bf16.mxu0 0
        %742 = vmatpush1.bf16.msra.mxu0 0
        %743 = vmatprep.subr.bf16.mxu0 0
        %744 = vmatpush1.bf16.msra.mxu0 0
        %745 = vmatprep.mubr.bf16.mxu0 0
        %746 = vmatmul.mubr.bf16.gmra.mrb[0].mxu0 %v702
        %v747 = vpop.f32.mrb[0].mxu0
        %v748 = vadd.f32 0.0, %v747
        %v749 = vpop.f32.mrb[0].mxu0
        %v750 = vadd.f32 0.0, %v749
        %v751 = vpop.f32.mrb[0].mxu0
        %v752 = vpop.f32.mrb[0].mxu0
        %753 = vdwg.mxu0
        %754 = vmatprep.subr.bf16.mxu0 0
        %755 = vmatpush1.bf16.msra.mxu0 %v711
        %756 = vmatprep.subr.bf16.mxu0 0
        %757 = vmatpush1.bf16.msra.mxu0 0
        %758 = vmatprep.subr.bf16.mxu0 0
        %759 = vmatpush1.bf16.msra.mxu0 0
        %760 = vmatprep.subr.bf16.mxu0 0
        %761 = vmatpush1.bf16.msra.mxu0 0
        %762 = vmatprep.subr.bf16.mxu0 0
        %763 = vmatpush1.bf16.msra.mxu0 0
        %764 = vmatprep.subr.bf16.mxu0 0
        %765 = vmatpush1.bf16.msra.mxu0 0
        %766 = vmatprep.subr.bf16.mxu0 0
        %767 = vmatpush1.bf16.msra.mxu0 0
        %768 = vmatprep.subr.bf16.mxu0 0
        %769 = vmatpush1.bf16.msra.mxu0 0
        %770 = vmatprep.subr.bf16.mxu0 0
        %771 = vmatpush1.bf16.msra.mxu0 0
        %772 = vmatprep.subr.bf16.mxu0 0
        %773 = vmatpush1.bf16.msra.mxu0 0
        %774 = vmatprep.subr.bf16.mxu0 0
        %775 = vmatpush1.bf16.msra.mxu0 0
        %776 = vmatprep.subr.bf16.mxu0 0
        %777 = vmatpush1.bf16.msra.mxu0 0
        %778 = vmatprep.subr.bf16.mxu0 0
        %779 = vmatpush1.bf16.msra.mxu0 0
        %780 = vmatprep.subr.bf16.mxu0 0
        %781 = vmatpush1.bf16.msra.mxu0 0
        %782 = vmatprep.subr.bf16.mxu0 0
        %783 = vmatpush1.bf16.msra.mxu0 0
        %784 = vmatprep.subr.bf16.mxu0 0
        %785 = vmatpush1.bf16.msra.mxu0 0
        %786 = vmatprep.mubr.bf16.mxu0 0
        %787 = vmatmul.mubr.bf16.gmra.mrb[0].mxu0 %v702
        %v788 = vpop.f32.mrb[0].mxu0
        %v789 = vadd.f32 0.0, %v788
        %v790 = vpop.f32.mrb[0].mxu0
        %v791 = vpop.f32.mrb[0].mxu0
        %v792 = vpop.f32.mrb[0].mxu0
        %793 = vdwg.mxu0
        %v794 = vadd.f32 %v667, %v748
        %v795 = vadd.f32 %v668, %v750
        %v796 = vadd.f32 %v669, %v789
        %797 = vst [vmem:[#allocation2] sm:$0xff] %v794
        %798 = vst [vmem:[#allocation2 + $0x8] sm:$0xff] %v795
        %799 = vst.msk [vmem:[#allocation2 + $0x10] sm:$0xff] %vm270, %v796
        %v800 = vld [vmem:[%s233] sm:$0x3f]
        %v801 = vld [vmem:[#allocation6] sm:$0xf]
        %v802 = vld [vmem:[#allocation2] sm:$0xff]
        %v803 = vld [vmem:[#allocation2 + $0x8] sm:$0xff]
        %v804 = vld [vmem:[#allocation2 + $0x10] sm:$0xff]
        %v806 = vunpack.c.l.b16 %v801
        %v807 = vpack.c.b16 %v806, %v806
        %808 = vrot.lane.b32.xlu0 %v807, 112
        %v809 = vpop.permute.xlu0 %808
        %v811 = vcombine.high %v800, %v800
        %v813 = vunpack.c.l.s4 1983009808
        %v814 = vunpack.c.0.s8 %v813
        %v815 = vlaneseq
        %v816 = vshrl.u32 %v815, 7
        %v817 = vsub.s32 %v814, %v816
        %v818 = vrot.slane %v800, %v817
        %v820 = vunpack.c.l.s4 1983009808
        %v821 = vunpack.c.0.s8 %v820
        %v822 = vlaneseq
        %v823 = vshrl.u32 %v822, 7
        %v824 = vsub.s32 %v821, %v823
        %v825 = vrot.slane %v811, %v824
        %v826 = vcombine.high %v818, %v818
        %827 = vrot.lane.b32.xlu0 %v818, 109
        %v828 = vpop.permute.xlu0 %827
        %829 = vrot.lane.b32.xlu0 %v826, 109
        %v830 = vpop.permute.xlu0 %829
        %831 = vrot.lane.b32.xlu0 %v825, 109
        %v832 = vpop.permute.xlu0 %831
        %vm833 = vcmask 891904
        %v834 = vsel %vm833, %v828, %v830
        %v835 = vsel %vm833, %v830, %v832
        %v837 = vsel %vm294, %v809, 0
        %v840 = vsel %vm298, %v834, 0
        %v843 = vsel %vm298, %v835, 0
        %v846 = vsel %vm298, %v832, 0
        %848 = vmatprep.subr.bf16.mxu0 %v843
        %849 = vmatpush1.bf16.msra.mxu0 %v840
        %850 = vmatprep.subr.bf16.mxu0 0
        %851 = vmatpush1.bf16.msra.mxu0 0
        %852 = vmatprep.subr.bf16.mxu0 0
        %853 = vmatpush1.bf16.msra.mxu0 0
        %854 = vmatprep.subr.bf16.mxu0 0
        %855 = vmatpush1.bf16.msra.mxu0 0
        %856 = vmatprep.subr.bf16.mxu0 0
        %857 = vmatpush1.bf16.msra.mxu0 0
        %858 = vmatprep.subr.bf16.mxu0 0
        %859 = vmatpush1.bf16.msra.mxu0 0
        %860 = vmatprep.subr.bf16.mxu0 0
        %861 = vmatpush1.bf16.msra.mxu0 0
        %862 = vmatprep.subr.bf16.mxu0 0
        %863 = vmatpush1.bf16.msra.mxu0 0
        %864 = vmatprep.subr.bf16.mxu0 0
        %865 = vmatpush1.bf16.msra.mxu0 0
        %866 = vmatprep.subr.bf16.mxu0 0
        %867 = vmatpush1.bf16.msra.mxu0 0
        %868 = vmatprep.subr.bf16.mxu0 0
        %869 = vmatpush1.bf16.msra.mxu0 0
        %870 = vmatprep.subr.bf16.mxu0 0
        %871 = vmatpush1.bf16.msra.mxu0 0
        %872 = vmatprep.subr.bf16.mxu0 0
        %873 = vmatpush1.bf16.msra.mxu0 0
        %874 = vmatprep.subr.bf16.mxu0 0
        %875 = vmatpush1.bf16.msra.mxu0 0
        %876 = vmatprep.subr.bf16.mxu0 0
        %877 = vmatpush1.bf16.msra.mxu0 0
        %878 = vmatprep.subr.bf16.mxu0 0
        %879 = vmatpush1.bf16.msra.mxu0 0
        %880 = vmatprep.mubr.bf16.mxu0 0
        %881 = vmatmul.mubr.bf16.gmra.mrb[0].mxu0 %v837
        %v882 = vpop.f32.mrb[0].mxu0
        %v883 = vadd.f32 0.0, %v882
        %v884 = vpop.f32.mrb[0].mxu0
        %v885 = vadd.f32 0.0, %v884
        %v886 = vpop.f32.mrb[0].mxu0
        %v887 = vpop.f32.mrb[0].mxu0
        %888 = vdwg.mxu0
        %889 = vmatprep.subr.bf16.mxu0 0
        %890 = vmatpush1.bf16.msra.mxu0 %v846
        %891 = vmatprep.subr.bf16.mxu0 0
        %892 = vmatpush1.bf16.msra.mxu0 0
        %893 = vmatprep.subr.bf16.mxu0 0
        %894 = vmatpush1.bf16.msra.mxu0 0
        %895 = vmatprep.subr.bf16.mxu0 0
        %896 = vmatpush1.bf16.msra.mxu0 0
        %897 = vmatprep.subr.bf16.mxu0 0
        %898 = vmatpush1.bf16.msra.mxu0 0
        %899 = vmatprep.subr.bf16.mxu0 0
        %900 = vmatpush1.bf16.msra.mxu0 0
        %901 = vmatprep.subr.bf16.mxu0 0
        %902 = vmatpush1.bf16.msra.mxu0 0
        %903 = vmatprep.subr.bf16.mxu0 0
        %904 = vmatpush1.bf16.msra.mxu0 0
        %905 = vmatprep.subr.bf16.mxu0 0
        %906 = vmatpush1.bf16.msra.mxu0 0
        %907 = vmatprep.subr.bf16.mxu0 0
        %908 = vmatpush1.bf16.msra.mxu0 0
        %909 = vmatprep.subr.bf16.mxu0 0
        %910 = vmatpush1.bf16.msra.mxu0 0
        %911 = vmatprep.subr.bf16.mxu0 0
        %912 = vmatpush1.bf16.msra.mxu0 0
        %913 = vmatprep.subr.bf16.mxu0 0
        %914 = vmatpush1.bf16.msra.mxu0 0
        %915 = vmatprep.subr.bf16.mxu0 0
        %916 = vmatpush1.bf16.msra.mxu0 0
        %917 = vmatprep.subr.bf16.mxu0 0
        %918 = vmatpush1.bf16.msra.mxu0 0
        %919 = vmatprep.subr.bf16.mxu0 0
        %920 = vmatpush1.bf16.msra.mxu0 0
        %921 = vmatprep.mubr.bf16.mxu0 0
        %922 = vmatmul.mubr.bf16.gmra.mrb[0].mxu0 %v837
        %v923 = vpop.f32.mrb[0].mxu0
        %v924 = vadd.f32 0.0, %v923
        %v925 = vpop.f32.mrb[0].mxu0
        %v926 = vpop.f32.mrb[0].mxu0
        %v927 = vpop.f32.mrb[0].mxu0
        %928 = vdwg.mxu0
        %v929 = vadd.f32 %v802, %v883
        %v930 = vadd.f32 %v803, %v885
        %v931 = vadd.f32 %v804, %v924
        %932 = vst [vmem:[#allocation2] sm:$0xff] %v929
        %933 = vst [vmem:[#allocation2 + $0x8] sm:$0xff] %v930
        %934 = vst.msk [vmem:[#allocation2 + $0x10] sm:$0xff] %vm270, %v931
        %v935 = vld [vmem:[%s233] sm:$0x3f]
        %v936 = vld [vmem:[#allocation6] sm:$0xf]
        %v937 = vld [vmem:[#allocation2] sm:$0xff]
        %v938 = vld [vmem:[#allocation2 + $0x8] sm:$0xff]
        %v939 = vld [vmem:[#allocation2 + $0x10] sm:$0xff]
        %v941 = vunpack.c.l.b16 %v936
        %v942 = vpack.c.b16 %v941, %v941
        %943 = vrot.lane.b32.xlu0 %v942, 108
        %v944 = vpop.permute.xlu0 %943
        %v946 = vcombine.high %v935, %v935
        %v948 = vunpack.c.l.s4 1983009808
        %v949 = vunpack.c.0.s8 %v948
        %v950 = vlaneseq
        %v951 = vshrl.u32 %v950, 7
        %v952 = vsub.s32 %v949, %v951
        %v953 = vrot.slane %v935, %v952
        %v955 = vunpack.c.l.s4 1983009808
        %v956 = vunpack.c.0.s8 %v955
        %v957 = vlaneseq
        %v958 = vshrl.u32 %v957, 7
        %v959 = vsub.s32 %v956, %v958
        %v960 = vrot.slane %v946, %v959
        %v961 = vcombine.high %v953, %v953
        %962 = vrot.lane.b32.xlu0 %v953, 108
        %v963 = vpop.permute.xlu0 %962
        %964 = vrot.lane.b32.xlu0 %v961, 108
        %v965 = vpop.permute.xlu0 %964
        %966 = vrot.lane.b32.xlu0 %v960, 108
        %v967 = vpop.permute.xlu0 %966
        %vm968 = vcmask 883712
        %v969 = vsel %vm968, %v963, %v965
        %v970 = vsel %vm968, %v965, %v967
        %v972 = vsel %vm294, %v944, 0
        %v975 = vsel %vm298, %v969, 0
        %v978 = vsel %vm298, %v970, 0
        %v981 = vsel %vm298, %v967, 0
        %983 = vmatprep.subr.bf16.mxu0 %v978
        %984 = vmatpush1.bf16.msra.mxu0 %v975
        %985 = vmatprep.subr.bf16.mxu0 0
        %986 = vmatpush1.bf16.msra.mxu0 0
        %987 = vmatprep.subr.bf16.mxu0 0
        %988 = vmatpush1.bf16.msra.mxu0 0
        %989 = vmatprep.subr.bf16.mxu0 0
        %990 = vmatpush1.bf16.msra.mxu0 0
        %991 = vmatprep.subr.bf16.mxu0 0
        %992 = vmatpush1.bf16.msra.mxu0 0
        %993 = vmatprep.subr.bf16.mxu0 0
        %994 = vmatpush1.bf16.msra.mxu0 0
        %995 = vmatprep.subr.bf16.mxu0 0
        %996 = vmatpush1.bf16.msra.mxu0 0
        %997 = vmatprep.subr.bf16.mxu0 0
        %998 = vmatpush1.bf16.msra.mxu0 0
        %999 = vmatprep.subr.bf16.mxu0 0
        %1000 = vmatpush1.bf16.msra.mxu0 0
        %1001 = vmatprep.subr.bf16.mxu0 0
        %1002 = vmatpush1.bf16.msra.mxu0 0
        %1003 = vmatprep.subr.bf16.mxu0 0
        %1004 = vmatpush1.bf16.msra.mxu0 0
        %1005 = vmatprep.subr.bf16.mxu0 0
        %1006 = vmatpush1.bf16.msra.mxu0 0
        %1007 = vmatprep.subr.bf16.mxu0 0
        %1008 = vmatpush1.bf16.msra.mxu0 0
        %1009 = vmatprep.subr.bf16.mxu0 0
        %1010 = vmatpush1.bf16.msra.mxu0 0
        %1011 = vmatprep.subr.bf16.mxu0 0
        %1012 = vmatpush1.bf16.msra.mxu0 0
        %1013 = vmatprep.subr.bf16.mxu0 0
        %1014 = vmatpush1.bf16.msra.mxu0 0
        %1015 = vmatprep.mubr.bf16.mxu0 0
        %1016 = vmatmul.mubr.bf16.gmra.mrb[0].mxu0 %v972
        %v1017 = vpop.f32.mrb[0].mxu0
        %v1018 = vadd.f32 0.0, %v1017
        %v1019 = vpop.f32.mrb[0].mxu0
        %v1020 = vadd.f32 0.0, %v1019
        %v1021 = vpop.f32.mrb[0].mxu0
        %v1022 = vpop.f32.mrb[0].mxu0
        %1023 = vdwg.mxu0
        %1024 = vmatprep.subr.bf16.mxu0 0
        %1025 = vmatpush1.bf16.msra.mxu0 %v981
        %1026 = vmatprep.subr.bf16.mxu0 0
        %1027 = vmatpush1.bf16.msra.mxu0 0
        %1028 = vmatprep.subr.bf16.mxu0 0
        %1029 = vmatpush1.bf16.msra.mxu0 0
        %1030 = vmatprep.subr.bf16.mxu0 0
        %1031 = vmatpush1.bf16.msra.mxu0 0
        %1032 = vmatprep.subr.bf16.mxu0 0
        %1033 = vmatpush1.bf16.msra.mxu0 0
        %1034 = vmatprep.subr.bf16.mxu0 0
        %1035 = vmatpush1.bf16.msra.mxu0 0
        %1036 = vmatprep.subr.bf16.mxu0 0
        %1037 = vmatpush1.bf16.msra.mxu0 0
        %1038 = vmatprep.subr.bf16.mxu0 0
        %1039 = vmatpush1.bf16.msra.mxu0 0
        %1040 = vmatprep.subr.bf16.mxu0 0
        %1041 = vmatpush1.bf16.msra.mxu0 0
        %1042 = vmatprep.subr.bf16.mxu0 0
        %1043 = vmatpush1.bf16.msra.mxu0 0
        %1044 = vmatprep.subr.bf16.mxu0 0
        %1045 = vmatpush1.bf16.msra.mxu0 0
        %1046 = vmatprep.subr.bf16.mxu0 0
        %1047 = vmatpush1.bf16.msra.mxu0 0
        %1048 = vmatprep.subr.bf16.mxu0 0
        %1049 = vmatpush1.bf16.msra.mxu0 0
        %1050 = vmatprep.subr.bf16.mxu0 0
        %1051 = vmatpush1.bf16.msra.mxu0 0
        %1052 = vmatprep.subr.bf16.mxu0 0
        %1053 = vmatpush1.bf16.msra.mxu0 0
        %1054 = vmatprep.subr.bf16.mxu0 0
        %1055 = vmatpush1.bf16.msra.mxu0 0
        %1056 = vmatprep.mubr.bf16.mxu0 0
        %1057 = vmatmul.mubr.bf16.gmra.mrb[0].mxu0 %v972
        %v1058 = vpop.f32.mrb[0].mxu0
        %v1059 = vadd.f32 0.0, %v1058
        %v1060 = vpop.f32.mrb[0].mxu0
        %v1061 = vpop.f32.mrb[0].mxu0
        %v1062 = vpop.f32.mrb[0].mxu0
        %1063 = vdwg.mxu0
        %v1064 = vadd.f32 %v937, %v1018
        %v1065 = vadd.f32 %v938, %v1020
        %v1066 = vadd.f32 %v939, %v1059
        %1067 = vst [vmem:[#allocation2] sm:$0xff] %v1064
        %1068 = vst [vmem:[#allocation2 + $0x8] sm:$0xff] %v1065
        %1069 = vst.msk [vmem:[#allocation2 + $0x10] sm:$0xff] %vm270, %v1066
        %v1070 = vld [vmem:[%s233] sm:$0x3f]
        %v1071 = vld [vmem:[#allocation6] sm:$0xf]
        %v1072 = vld [vmem:[#allocation2] sm:$0xff]
        %v1073 = vld [vmem:[#allocation2 + $0x8] sm:$0xff]
        %v1074 = vld [vmem:[#allocation2 + $0x10] sm:$0xff]
        %v1076 = vunpack.c.l.b16 %v1071
        %v1077 = vpack.c.b16 %v1076, %v1076
        %1078 = vrot.lane.b32.xlu0 %v1077, 104
        %v1079 = vpop.permute.xlu0 %1078
        %v1081 = vcombine.high %v1070, %v1070
        %v1083 = vunpack.c.l.s4 1983009808
        %v1084 = vunpack.c.0.s8 %v1083
        %v1085 = vlaneseq
        %v1086 = vshrl.u32 %v1085, 7
        %v1087 = vsub.s32 %v1084, %v1086
        %v1088 = vrot.slane %v1070, %v1087
        %v1090 = vunpack.c.l.s4 1983009808
        %v1091 = vunpack.c.0.s8 %v1090
        %v1092 = vlaneseq
        %v1093 = vshrl.u32 %v1092, 7
        %v1094 = vsub.s32 %v1091, %v1093
        %v1095 = vrot.slane %v1081, %v1094
        %v1096 = vcombine.high %v1088, %v1088
        %1097 = vrot.lane.b32.xlu0 %v1088, 92
        %v1098 = vpop.permute.xlu0 %1097
        %1099 = vrot.lane.b32.xlu0 %v1096, 92
        %v1100 = vpop.permute.xlu0 %1099
        %1101 = vrot.lane.b32.xlu0 %v1095, 92
        %v1102 = vpop.permute.xlu0 %1101
        %vm1103 = vcmask 752640
        %v1104 = vsel %vm1103, %v1098, %v1100
        %v1105 = vsel %vm1103, %v1100, %v1102
        %v1107 = vsel %vm294, %v1079, 0
        %v1110 = vsel %vm298, %v1104, 0
        %v1113 = vsel %vm298, %v1105, 0
        %v1116 = vsel %vm298, %v1102, 0
        %1118 = vmatprep.subr.bf16.mxu0 %v1113
        %1119 = vmatpush1.bf16.msra.mxu0 %v1110
        %1120 = vmatprep.subr.bf16.mxu0 0
        %1121 = vmatpush1.bf16.msra.mxu0 0
        %1122 = vmatprep.subr.bf16.mxu0 0
        %1123 = vmatpush1.bf16.msra.mxu0 0
        %1124 = vmatprep.subr.bf16.mxu0 0
        %1125 = vmatpush1.bf16.msra.mxu0 0
        %1126 = vmatprep.subr.bf16.mxu0 0
        %1127 = vmatpush1.bf16.msra.mxu0 0
        %1128 = vmatprep.subr.bf16.mxu0 0
        %1129 = vmatpush1.bf16.msra.mxu0 0
        %1130 = vmatprep.subr.bf16.mxu0 0
        %1131 = vmatpush1.bf16.msra.mxu0 0
        %1132 = vmatprep.subr.bf16.mxu0 0
        %1133 = vmatpush1.bf16.msra.mxu0 0
        %1134 = vmatprep.subr.bf16.mxu0 0
        %1135 = vmatpush1.bf16.msra.mxu0 0
        %1136 = vmatprep.subr.bf16.mxu0 0
        %1137 = vmatpush1.bf16.msra.mxu0 0
        %1138 = vmatprep.subr.bf16.mxu0 0
        %1139 = vmatpush1.bf16.msra.mxu0 0
        %1140 = vmatprep.subr.bf16.mxu0 0
        %1141 = vmatpush1.bf16.msra.mxu0 0
        %1142 = vmatprep.subr.bf16.mxu0 0
        %1143 = vmatpush1.bf16.msra.mxu0 0
        %1144 = vmatprep.subr.bf16.mxu0 0
        %1145 = vmatpush1.bf16.msra.mxu0 0
        %1146 = vmatprep.subr.bf16.mxu0 0
        %1147 = vmatpush1.bf16.msra.mxu0 0
        %1148 = vmatprep.subr.bf16.mxu0 0
        %1149 = vmatpush1.bf16.msra.mxu0 0
        %1150 = vmatprep.mubr.bf16.mxu0 0
        %1151 = vmatmul.mubr.bf16.gmra.mrb[0].mxu0 %v1107
        %v1152 = vpop.f32.mrb[0].mxu0
        %v1153 = vadd.f32 0.0, %v1152
        %v1154 = vpop.f32.mrb[0].mxu0
        %v1155 = vadd.f32 0.0, %v1154
        %v1156 = vpop.f32.mrb[0].mxu0
        %v1157 = vpop.f32.mrb[0].mxu0
        %1158 = vdwg.mxu0
        %1159 = vmatprep.subr.bf16.mxu0 0
        %1160 = vmatpush1.bf16.msra.mxu0 %v1116
        %1161 = vmatprep.subr.bf16.mxu0 0
        %1162 = vmatpush1.bf16.msra.mxu0 0
        %1163 = vmatprep.subr.bf16.mxu0 0
        %1164 = vmatpush1.bf16.msra.mxu0 0
        %1165 = vmatprep.subr.bf16.mxu0 0
        %1166 = vmatpush1.bf16.msra.mxu0 0
        %1167 = vmatprep.subr.bf16.mxu0 0
        %1168 = vmatpush1.bf16.msra.mxu0 0
        %1169 = vmatprep.subr.bf16.mxu0 0
        %1170 = vmatpush1.bf16.msra.mxu0 0
        %1171 = vmatprep.subr.bf16.mxu0 0
        %1172 = vmatpush1.bf16.msra.mxu0 0
        %1173 = vmatprep.subr.bf16.mxu0 0
        %1174 = vmatpush1.bf16.msra.mxu0 0
        %1175 = vmatprep.subr.bf16.mxu0 0
        %1176 = vmatpush1.bf16.msra.mxu0 0
        %1177 = vmatprep.subr.bf16.mxu0 0
        %1178 = vmatpush1.bf16.msra.mxu0 0
        %1179 = vmatprep.subr.bf16.mxu0 0
        %1180 = vmatpush1.bf16.msra.mxu0 0
        %1181 = vmatprep.subr.bf16.mxu0 0
        %1182 = vmatpush1.bf16.msra.mxu0 0
        %1183 = vmatprep.subr.bf16.mxu0 0
        %1184 = vmatpush1.bf16.msra.mxu0 0
        %1185 = vmatprep.subr.bf16.mxu0 0
        %1186 = vmatpush1.bf16.msra.mxu0 0
        %1187 = vmatprep.subr.bf16.mxu0 0
        %1188 = vmatpush1.bf16.msra.mxu0 0
        %1189 = vmatprep.subr.bf16.mxu0 0
        %1190 = vmatpush1.bf16.msra.mxu0 0
        %1191 = vmatprep.mubr.bf16.mxu0 0
        %1192 = vmatmul.mubr.bf16.gmra.mrb[0].mxu0 %v1107
        %v1193 = vpop.f32.mrb[0].mxu0
        %v1194 = vadd.f32 0.0, %v1193
        %v1195 = vpop.f32.mrb[0].mxu0
        %v1196 = vpop.f32.mrb[0].mxu0
        %v1197 = vpop.f32.mrb[0].mxu0
        %1198 = vdwg.mxu0
        %v1199 = vadd.f32 %v1072, %v1153
        %v1200 = vadd.f32 %v1073, %v1155
        %v1201 = vadd.f32 %v1074, %v1194
        %1202 = vst [vmem:[#allocation2] sm:$0xff] %v1199
        %1203 = vst [vmem:[#allocation2 + $0x8] sm:$0xff] %v1200
        %1204 = vst.msk [vmem:[#allocation2 + $0x10] sm:$0xff] %vm270, %v1201
        %v1205 = vld [vmem:[%s233] sm:$0x3f]
        %v1206 = vld [vmem:[#allocation6] sm:$0xf]
        %v1207 = vld [vmem:[#allocation2] sm:$0xff]
        %v1208 = vld [vmem:[#allocation2 + $0x8] sm:$0xff]
        %v1209 = vld [vmem:[#allocation2 + $0x10] sm:$0xff]
        %v1211 = vunpack.c.l.b16 %v1206
        %v1212 = vpack.c.b16 %v1211, %v1211
        %1213 = vrot.lane.b32.xlu0 %v1212, 100
        %v1214 = vpop.permute.xlu0 %1213
        %v1216 = vcombine.high %v1205, %v1205
        %v1218 = vunpack.c.l.s4 1983009808
        %v1219 = vunpack.c.0.s8 %v1218
        %v1220 = vlaneseq
        %v1221 = vshrl.u32 %v1220, 7
        %v1222 = vsub.s32 %v1219, %v1221
        %v1223 = vrot.slane %v1205, %v1222
        %v1225 = vunpack.c.l.s4 1983009808
        %v1226 = vunpack.c.0.s8 %v1225
        %v1227 = vlaneseq
        %v1228 = vshrl.u32 %v1227, 7
        %v1229 = vsub.s32 %v1226, %v1228
        %v1230 = vrot.slane %v1216, %v1229
        %v1231 = vcombine.high %v1223, %v1223
        %1232 = vrot.lane.b32.xlu0 %v1223, 91
        %v1233 = vpop.permute.xlu0 %1232
        %1234 = vrot.lane.b32.xlu0 %v1231, 91
        %v1235 = vpop.permute.xlu0 %1234
        %1236 = vrot.lane.b32.xlu0 %v1230, 91
        %v1237 = vpop.permute.xlu0 %1236
        %vm1238 = vcmask 744448
        %v1239 = vsel %vm1238, %v1233, %v1235
        %v1240 = vsel %vm1238, %v1235, %v1237
        %v1242 = vsel %vm294, %v1214, 0
        %v1245 = vsel %vm298, %v1239, 0
        %v1248 = vsel %vm298, %v1240, 0
        %v1251 = vsel %vm298, %v1237, 0
        %1253 = vmatprep.subr.bf16.mxu0 %v1248
        %1254 = vmatpush1.bf16.msra.mxu0 %v1245
        %1255 = vmatprep.subr.bf16.mxu0 0
        %1256 = vmatpush1.bf16.msra.mxu0 0
        %1257 = vmatprep.subr.bf16.mxu0 0
        %1258 = vmatpush1.bf16.msra.mxu0 0
        %1259 = vmatprep.subr.bf16.mxu0 0
        %1260 = vmatpush1.bf16.msra.mxu0 0
        %1261 = vmatprep.subr.bf16.mxu0 0
        %1262 = vmatpush1.bf16.msra.mxu0 0
        %1263 = vmatprep.subr.bf16.mxu0 0
        %1264 = vmatpush1.bf16.msra.mxu0 0
        %1265 = vmatprep.subr.bf16.mxu0 0
        %1266 = vmatpush1.bf16.msra.mxu0 0
        %1267 = vmatprep.subr.bf16.mxu0 0
        %1268 = vmatpush1.bf16.msra.mxu0 0
        %1269 = vmatprep.subr.bf16.mxu0 0
        %1270 = vmatpush1.bf16.msra.mxu0 0
        %1271 = vmatprep.subr.bf16.mxu0 0
        %1272 = vmatpush1.bf16.msra.mxu0 0
        %1273 = vmatprep.subr.bf16.mxu0 0
        %1274 = vmatpush1.bf16.msra.mxu0 0
        %1275 = vmatprep.subr.bf16.mxu0 0
        %1276 = vmatpush1.bf16.msra.mxu0 0
        %1277 = vmatprep.subr.bf16.mxu0 0
        %1278 = vmatpush1.bf16.msra.mxu0 0
        %1279 = vmatprep.subr.bf16.mxu0 0
        %1280 = vmatpush1.bf16.msra.mxu0 0
        %1281 = vmatprep.subr.bf16.mxu0 0
        %1282 = vmatpush1.bf16.msra.mxu0 0
        %1283 = vmatprep.subr.bf16.mxu0 0
        %1284 = vmatpush1.bf16.msra.mxu0 0
        %1285 = vmatprep.mubr.bf16.mxu0 0
        %1286 = vmatmul.mubr.bf16.gmra.mrb[0].mxu0 %v1242
        %v1287 = vpop.f32.mrb[0].mxu0
        %v1288 = vadd.f32 0.0, %v1287
        %v1289 = vpop.f32.mrb[0].mxu0
        %v1290 = vadd.f32 0.0, %v1289
        %v1291 = vpop.f32.mrb[0].mxu0
        %v1292 = vpop.f32.mrb[0].mxu0
        %1293 = vdwg.mxu0
        %1294 = vmatprep.subr.bf16.mxu0 0
        %1295 = vmatpush1.bf16.msra.mxu0 %v1251
        %1296 = vmatprep.subr.bf16.mxu0 0
        %1297 = vmatpush1.bf16.msra.mxu0 0
        %1298 = vmatprep.subr.bf16.mxu0 0
        %1299 = vmatpush1.bf16.msra.mxu0 0
        %1300 = vmatprep.subr.bf16.mxu0 0
        %1301 = vmatpush1.bf16.msra.mxu0 0
        %1302 = vmatprep.subr.bf16.mxu0 0
        %1303 = vmatpush1.bf16.msra.mxu0 0
        %1304 = vmatprep.subr.bf16.mxu0 0
        %1305 = vmatpush1.bf16.msra.mxu0 0
        %1306 = vmatprep.subr.bf16.mxu0 0
        %1307 = vmatpush1.bf16.msra.mxu0 0
        %1308 = vmatprep.subr.bf16.mxu0 0
        %1309 = vmatpush1.bf16.msra.mxu0 0
        %1310 = vmatprep.subr.bf16.mxu0 0
        %1311 = vmatpush1.bf16.msra.mxu0 0
        %1312 = vmatprep.subr.bf16.mxu0 0
        %1313 = vmatpush1.bf16.msra.mxu0 0
        %1314 = vmatprep.subr.bf16.mxu0 0
        %1315 = vmatpush1.bf16.msra.mxu0 0
        %1316 = vmatprep.subr.bf16.mxu0 0
        %1317 = vmatpush1.bf16.msra.mxu0 0
        %1318 = vmatprep.subr.bf16.mxu0 0
        %1319 = vmatpush1.bf16.msra.mxu0 0
        %1320 = vmatprep.subr.bf16.mxu0 0
        %1321 = vmatpush1.bf16.msra.mxu0 0
        %1322 = vmatprep.subr.bf16.mxu0 0
        %1323 = vmatpush1.bf16.msra.mxu0 0
        %1324 = vmatprep.subr.bf16.mxu0 0
        %1325 = vmatpush1.bf16.msra.mxu0 0
        %1326 = vmatprep.mubr.bf16.mxu0 0
        %1327 = vmatmul.mubr.bf16.gmra.mrb[0].mxu0 %v1242
        %v1328 = vpop.f32.mrb[0].mxu0
        %v1329 = vadd.f32 0.0, %v1328
        %v1330 = vpop.f32.mrb[0].mxu0
        %v1331 = vpop.f32.mrb[0].mxu0
        %v1332 = vpop.f32.mrb[0].mxu0
        %1333 = vdwg.mxu0
        %v1334 = vadd.f32 %v1207, %v1288
        %v1335 = vadd.f32 %v1208, %v1290
        %v1336 = vadd.f32 %v1209, %v1329
        %1337 = vst [vmem:[#allocation2] sm:$0xff] %v1334
        %1338 = vst [vmem:[#allocation2 + $0x8] sm:$0xff] %v1335
        %1339 = vst.msk [vmem:[#allocation2 + $0x10] sm:$0xff] %vm270, %v1336
        %v1340 = vld [vmem:[%s233] sm:$0x3f]
        %v1341 = vld [vmem:[#allocation6] sm:$0xf]
        %v1342 = vld [vmem:[#allocation2] sm:$0xff]
        %v1343 = vld [vmem:[#allocation2 + $0x8] sm:$0xff]
        %v1344 = vld [vmem:[#allocation2 + $0x10] sm:$0xff]
        %v1346 = vunpack.c.l.b16 %v1341
        %v1347 = vpack.c.b16 %v1346, %v1346
        %1348 = vrot.lane.b32.xlu0 %v1347, 96
        %v1349 = vpop.permute.xlu0 %1348
        %v1351 = vcombine.high %v1340, %v1340
        %v1353 = vunpack.c.l.s4 1983009808
        %v1354 = vunpack.c.0.s8 %v1353
        %v1355 = vlaneseq
        %v1356 = vshrl.u32 %v1355, 7
        %v1357 = vsub.s32 %v1354, %v1356
        %v1358 = vrot.slane %v1340, %v1357
        %v1360 = vunpack.c.l.s4 1983009808
        %v1361 = vunpack.c.0.s8 %v1360
        %v1362 = vlaneseq
        %v1363 = vshrl.u32 %v1362, 7
        %v1364 = vsub.s32 %v1361, %v1363
        %v1365 = vrot.slane %v1351, %v1364
        %v1366 = vcombine.high %v1358, %v1358
        %1367 = vrot.lane.b32.xlu0 %v1358, 90
        %v1368 = vpop.permute.xlu0 %1367
        %1369 = vrot.lane.b32.xlu0 %v1366, 90
        %v1370 = vpop.permute.xlu0 %1369
        %1371 = vrot.lane.b32.xlu0 %v1365, 90
        %v1372 = vpop.permute.xlu0 %1371
        %vm1373 = vcmask 736256
        %v1374 = vsel %vm1373, %v1368, %v1370
        %v1375 = vsel %vm1373, %v1370, %v1372
        %v1377 = vsel %vm294, %v1349, 0
        %v1380 = vsel %vm298, %v1374, 0
        %v1383 = vsel %vm298, %v1375, 0
        %v1386 = vsel %vm298, %v1372, 0
        %1388 = vmatprep.subr.bf16.mxu0 %v1383
        %1389 = vmatpush1.bf16.msra.mxu0 %v1380
        %1390 = vmatprep.subr.bf16.mxu0 0
        %1391 = vmatpush1.bf16.msra.mxu0 0
        %1392 = vmatprep.subr.bf16.mxu0 0
        %1393 = vmatpush1.bf16.msra.mxu0 0
        %1394 = vmatprep.subr.bf16.mxu0 0
        %1395 = vmatpush1.bf16.msra.mxu0 0
        %1396 = vmatprep.subr.bf16.mxu0 0
        %1397 = vmatpush1.bf16.msra.mxu0 0
        %1398 = vmatprep.subr.bf16.mxu0 0
        %1399 = vmatpush1.bf16.msra.mxu0 0
        %1400 = vmatprep.subr.bf16.mxu0 0
        %1401 = vmatpush1.bf16.msra.mxu0 0
        %1402 = vmatprep.subr.bf16.mxu0 0
        %1403 = vmatpush1.bf16.msra.mxu0 0
        %1404 = vmatprep.subr.bf16.mxu0 0
        %1405 = vmatpush1.bf16.msra.mxu0 0
        %1406 = vmatprep.subr.bf16.mxu0 0
        %1407 = vmatpush1.bf16.msra.mxu0 0
        %1408 = vmatprep.subr.bf16.mxu0 0
        %1409 = vmatpush1.bf16.msra.mxu0 0
        %1410 = vmatprep.subr.bf16.mxu0 0
        %1411 = vmatpush1.bf16.msra.mxu0 0
        %1412 = vmatprep.subr.bf16.mxu0 0
        %1413 = vmatpush1.bf16.msra.mxu0 0
        %1414 = vmatprep.subr.bf16.mxu0 0
        %1415 = vmatpush1.bf16.msra.mxu0 0
        %1416 = vmatprep.subr.bf16.mxu0 0
        %1417 = vmatpush1.bf16.msra.mxu0 0
        %1418 = vmatprep.subr.bf16.mxu0 0
        %1419 = vmatpush1.bf16.msra.mxu0 0
        %1420 = vmatprep.mubr.bf16.mxu0 0
        %1421 = vmatmul.mubr.bf16.gmra.mrb[0].mxu0 %v1377
        %v1422 = vpop.f32.mrb[0].mxu0
        %v1423 = vadd.f32 0.0, %v1422
        %v1424 = vpop.f32.mrb[0].mxu0
        %v1425 = vadd.f32 0.0, %v1424
        %v1426 = vpop.f32.mrb[0].mxu0
        %v1427 = vpop.f32.mrb[0].mxu0
        %1428 = vdwg.mxu0
        %1429 = vmatprep.subr.bf16.mxu0 0
        %1430 = vmatpush1.bf16.msra.mxu0 %v1386
        %1431 = vmatprep.subr.bf16.mxu0 0
        %1432 = vmatpush1.bf16.msra.mxu0 0
        %1433 = vmatprep.subr.bf16.mxu0 0
        %1434 = vmatpush1.bf16.msra.mxu0 0
        %1435 = vmatprep.subr.bf16.mxu0 0
        %1436 = vmatpush1.bf16.msra.mxu0 0
        %1437 = vmatprep.subr.bf16.mxu0 0
        %1438 = vmatpush1.bf16.msra.mxu0 0
        %1439 = vmatprep.subr.bf16.mxu0 0
        %1440 = vmatpush1.bf16.msra.mxu0 0
        %1441 = vmatprep.subr.bf16.mxu0 0
        %1442 = vmatpush1.bf16.msra.mxu0 0
        %1443 = vmatprep.subr.bf16.mxu0 0
        %1444 = vmatpush1.bf16.msra.mxu0 0
        %1445 = vmatprep.subr.bf16.mxu0 0
        %1446 = vmatpush1.bf16.msra.mxu0 0
        %1447 = vmatprep.subr.bf16.mxu0 0
        %1448 = vmatpush1.bf16.msra.mxu0 0
        %1449 = vmatprep.subr.bf16.mxu0 0
        %1450 = vmatpush1.bf16.msra.mxu0 0
        %1451 = vmatprep.subr.bf16.mxu0 0
        %1452 = vmatpush1.bf16.msra.mxu0 0
        %1453 = vmatprep.subr.bf16.mxu0 0
        %1454 = vmatpush1.bf16.msra.mxu0 0
        %1455 = vmatprep.subr.bf16.mxu0 0
        %1456 = vmatpush1.bf16.msra.mxu0 0
        %1457 = vmatprep.subr.bf16.mxu0 0
        %1458 = vmatpush1.bf16.msra.mxu0 0
        %1459 = vmatprep.subr.bf16.mxu0 0
        %1460 = vmatpush1.bf16.msra.mxu0 0
        %1461 = vmatprep.mubr.bf16.mxu0 0
        %1462 = vmatmul.mubr.bf16.gmra.mrb[0].mxu0 %v1377
        %v1463 = vpop.f32.mrb[0].mxu0
        %v1464 = vadd.f32 0.0, %v1463
        %v1465 = vpop.f32.mrb[0].mxu0
        %v1466 = vpop.f32.mrb[0].mxu0
        %v1467 = vpop.f32.mrb[0].mxu0
        %1468 = vdwg.mxu0
        %v1469 = vadd.f32 %v1342, %v1423
        %v1470 = vadd.f32 %v1343, %v1425
        %v1471 = vadd.f32 %v1344, %v1464
        %1472 = vst [vmem:[#allocation2] sm:$0xff] %v1469
        %1473 = vst [vmem:[#allocation2 + $0x8] sm:$0xff] %v1470
        %1474 = vst.msk [vmem:[#allocation2 + $0x10] sm:$0xff] %vm270, %v1471
        %v1475 = vld [vmem:[#allocation2] sm:$0xff]
        %v1476 = vld [vmem:[#allocation2 + $0x8] sm:$0xff]
        %v1477 = vld [vmem:[#allocation2 + $0x10] sm:$0xff]
        %v1478 = vld [vmem:[#allocation3] sm:$0x7]
        %v1480 = vlaneseq
        %v1481 = vshrl.u32 %v1480, 7
        %v1482 = vsub.s32 0, %v1481
        %v1483 = vrot.slane %v1478, %v1482
        %v1484 = vlaneseq
        %v1485 = vshrl.u32 %v1484, 7
        %v1486 = vsub.s32 1, %v1485
        %v1487 = vrot.slane %v1478, %v1486
        %v1488 = vlaneseq
        %v1489 = vshrl.u32 %v1488, 7
        %v1490 = vsub.s32 2, %v1489
        %v1491 = vrot.slane %v1478, %v1490
        %v1495 = vmul.f32 %v1475, %v1483
        %v1496 = vmul.f32 %v1476, %v1487
        %v1497 = vmul.f32 %v1477, %v1491
        %v1498 = vld [vmem:[#allocation10] sm:$0xff]
        %v1499 = vadd.f32 %v1495, %v1496
        %v1500 = vsel %vm270, %v1497, 0.0
        %v1501 = vadd.f32 %v1499, %v1500
        %1502 = vadd.xlane.f32.xlu0 %v1501
        %v1503 = vpop.xlane.xlu0 %1502
        %v1504 = vadd.f32 %v1498, %v1503
        %vm1505 = vcmask 7168
        %1506 = vst.msk [vmem:[#allocation10] sm:$0xff] %vm1505, %v1504
        %v1507 = vld [vmem:[#allocation12] sm:$0xff]
        %v1508 = vmul.f32 %v1495, %v1475
        %v1509 = vmul.f32 %v1496, %v1476
        %v1510 = vmul.f32 %v1497, %v1477
        %v1511 = vadd.f32 %v1508, %v1509
        %v1512 = vsel %vm270, %v1510, 0.0
        %v1513 = vadd.f32 %v1511, %v1512
        %1514 = vadd.xlane.f32.xlu0 %v1513
        %v1515 = vpop.xlane.xlu0 %1514
        %v1516 = vadd.f32 %v1507, %v1515
        %1517 = vst.msk [vmem:[#allocation12] sm:$0xff] %vm1505, %v1516
        %v1518 = vpack.c.bf16 %v1475, %v1475
        %v1519 = vpack.c.bf16 %v1476, %v1476
        %v1520 = vpack.c.bf16 %v1477, %v1477
        %v1524 = vunpack.c.l.b16 %v1518
        %v1525 = vunpack.c.l.b16 %v1519
        %v1526 = vunpack.c.l.b16 %v1520
        %v1527 = vpack.c.b16 %v1525, %v1524
        %v1528 = vpack.c.b16 %v1526, %v1526
        %1531 = vst [vmem:[%s255] sm:$0xff] %v1527
        %vm1532 = vcmask 257024
        %1533 = vst.msk [vmem:[%s255 + $0x8] sm:$0xf] %vm1532, %v1528
        %s1534 = sand.u32 %s99, 1
        %s1535 = scalar_lea.sflag [#allocation5], %s1534
        %s1536 = sand.u32 %s99, 1
        %s1537 = smul.addr %s1536, 12
        %s1538 = scalar_lea.vmem [#allocation9], %s1537
        // Predicated region
        $region49: #{conv_block_forward.2} parent=31 // pred_check
          %p1539 = pneg %p109
        $region50: #{conv_block_forward.2} parent=31 // pred_check_branch
          %1541 = sbr.rel (%p1539) target = $region52
        $region51: #{conv_block_forward.2} parent=31 // pred_region
          %s1543 = ssub.s32 192, 192
          %1544 = vsyncadd %s1535, %s1543
          %s1545 = smul.addr %s23, 3
          %s1546 = smul.addr %s1545, 64
          %s1547 = scalar_lea.hbm %s3, %s1546
          %s1549 = sshll.u32 %s1538, 4
          %s1550 = int_to_ptr.vmem [resolvable:$true] %s1549
          %1552 = dma.vmem_to_hbm [thread:$0]  %s1550, 192, %s1547, %s1535
        $region52: #{conv_block_forward.2} parent=31 // pred_fallthru
          _
        // Predicated region
        $region53: #{conv_block_forward.2} parent=31 // pred_check
          %p1553 = pneg %p130
        $region54: #{conv_block_forward.2} parent=31 // pred_check_branch
          %1555 = sbr.rel (%p1553) target = $region56
        $region55: #{conv_block_forward.2} parent=31 // pred_region
          %s1557 = ssub.s32 128, 128
          %1558 = vsyncadd [#allocation11], %s1557
          %s1560 = sshll.u32 [#allocation10], 4
          %s1561 = int_to_ptr.vmem [resolvable:$true] %s1560
          %1563 = dma.vmem_to_hbm [thread:$0]  %s1561, 128, %s4, [#allocation11]
        $region56: #{conv_block_forward.2} parent=31 // pred_fallthru
          _
        // Predicated region
        $region57: #{conv_block_forward.2} parent=31 // pred_check
          %p1564 = pneg %p151
        $region58: #{conv_block_forward.2} parent=31 // pred_check_branch
          %1566 = sbr.rel (%p1564) target = $region60
        $region59: #{conv_block_forward.2} parent=31 // pred_region
          %s1568 = ssub.s32 128, 128
          %1569 = vsyncadd [#allocation11], %s1568
          %s1571 = sshll.u32 [#allocation12], 4
          %s1572 = int_to_ptr.vmem [resolvable:$true] %s1571
          %1574 = dma.vmem_to_hbm [thread:$0]  %s1572, 128, %s5, [#allocation11]
        $region60: #{conv_block_forward.2} parent=31 // pred_fallthru
          _
        // Predicated region
        $region61: #{conv_block_forward.2} parent=31 // pred_check
          %p1575 = pneg %p130
        $region62: #{conv_block_forward.2} parent=31 // pred_check_branch
          %1577 = sbr.rel (%p1575) target = $region64
        $region63: #{conv_block_forward.2} parent=31 // pred_region
          %1578 = dma.done [#allocation11], 128
        $region64: #{conv_block_forward.2} parent=31 // pred_fallthru
          _
        // Predicated region
        $region65: #{conv_block_forward.2} parent=31 // pred_check
          %p1579 = pneg %p151
        $region66: #{conv_block_forward.2} parent=31 // pred_check_branch
          %1581 = sbr.rel (%p1579) target = $region68
        $region67: #{conv_block_forward.2} parent=31 // pred_region
          %1582 = dma.done [#allocation11], 128
        $region68: #{conv_block_forward.2} parent=31 // pred_fallthru
          _
      $region32: #{conv_block_forward.2} parent=5 // pred_fallthru
        _
      %p1583 = scmp.le.s32.totalorder 2, %s18
      // Predicated region
      $region69: #{conv_block_forward.2} parent=5 // pred_check
        %p1584 = pneg %p1583
      $region70: #{conv_block_forward.2} parent=5 // pred_check_branch
        %1586 = sbr.rel (%p1584) target = $region72
      $region71: #{conv_block_forward.2} parent=5 // pred_region
        %s1587 = ssub.s32 %s18, 2
        // Predicated region
        $region73: #{conv_block_forward.2} parent=71 // pred_check
          %p1588 = pneg %p115
        $region74: #{conv_block_forward.2} parent=71 // pred_check_branch
          %1590 = sbr.rel (%p1588) target = $region76
        $region75: #{conv_block_forward.2} parent=71 // pred_region
          %s1591 = sand.u32 %s100, 1
          %s1592 = scalar_lea.sflag [#allocation5], %s1591
          %s1593 = sand.u32 %s100, 1
          %s1594 = smul.addr %s1593, 12
          %s1595 = scalar_lea.vmem [#allocation9], %s1594
          %1596 = dma.done %s1592, 192
        $region76: #{conv_block_forward.2} parent=71 // pred_fallthru
          _
      $region72: #{conv_block_forward.2} parent=5 // pred_fallthru
        _
    $region6: #{conv_block_forward.2} parent=1 // loop_footer
      %s22 = sadd.s32 1, %s18
    $region7: #{conv_block_forward.2} parent=1 // loop_footer_branch
      %17 = sbr.rel target = $region3
    $region8: #{conv_block_forward.2} parent=1 // loop_exit
      _
    %1597 = vsyncpa [#allocation4], 1
    %s1598 = scalar_lea.sflag [#allocation4], 1
    %1599 = vsyncpa %s1598, 1
    %1600 = vsyncpa [#allocation7], 1
    %1601 = vsyncpa [#allocation5], 1
    %s1602 = scalar_lea.sflag [#allocation5], 1
    %1603 = vsyncpa %s1602, 1
    %1604 = vsyncpa [#allocation11], 1

</llo_original>
